<compile_context>
chip_gen: v5e
topology: v5e:2x2
jax: 0.10.0
libtpu: 0.0.40
codegen_flags: <defaults>
</compile_context>

<pallas_src>
import functools

import jax
import jax.numpy as jnp
from jax import lax
from jax.experimental import pallas as pl
from jax.experimental.pallas import tpu as pltpu


# ----------------------------------------------------------------------------
# Fused kernel: [per-layer hoisted x-projection -> unrolled recurrence] x L
# followed by the final FC, all in one invocation.
# PyTorch nn.LSTM gate order: i, f, g, o ;
# gates = x @ Wih^T + h @ Whh^T + b_ih + b_hh
# ----------------------------------------------------------------------------
def _fused_robustlog_kernel(*refs, S, B, H, L, mm_dtype):
    """refs = (x_flat, [wih_t, whh_t, b]*L, fc_w_t, fc_b, out, xproj_sc, hseq_sc)

    x_flat:   (S*B, F)  time-major, rows [t*B:(t+1)*B] hold timestep t
    wih_t:    (in_f, 4H)   whh_t: (H, 4H)   b: (1, 4H) == b_ih + b_hh
    fc_w_t:   (H, K)       fc_b:  (1, K)
    out:      (B, K)
    xproj_sc: VMEM (S*B, 4H)  hoisted input projection
    hseq_sc:  VMEM (S*B, H)   inter-layer hidden sequence (never touches HBM)
    """
    x_ref = refs[0]
    lstm_refs = refs[1:1 + 3 * L]
    fc_w_ref, fc_b_ref, out_ref, xproj_sc, hseq_sc = refs[1 + 3 * L:]

    def mm(a, b):
        return jnp.dot(a.astype(mm_dtype), b.astype(mm_dtype),
                       preferred_element_type=jnp.float32)

    # Lane mask for the tanh gate block g (lanes [2H, 3H)). Hoisted: built once
    # and reused by every timestep of every layer.
    lane = lax.broadcasted_iota(jnp.int32, (B, 4 * H), 1)
    is_g_lane = (lane >= 2 * H) & (lane < 3 * H)

    h = jnp.zeros((B, H), jnp.float32)
    for layer in range(L):
        wih_ref, whh_ref, b_ref = lstm_refs[3 * layer:3 * layer + 3]

        # Hoisted input projection for the whole sequence: one big MXU matmul
        # per layer (bias folded in here, off the recurrent critical path).
        src = x_ref if layer == 0 else hseq_sc
        xproj_sc[...] = mm(src[...], wih_ref[...]) + b_ref[...]

        whh = whh_ref[...]                       # loaded into vregs once/layer
        h = jnp.zeros((B, H), jnp.float32)
        c = jnp.zeros((B, H), jnp.float32)

        for t in range(S):                       # short static loop: unrolled
            pre = xproj_sc[t * B:(t + 1) * B, :] + mm(h, whh)      # (B, 4H)
            # Single full-vreg tanh (EUP) + two lane-selects (VPU):
            #   sigmoid(x) = 0.5 * tanh(0.5 * x) + 0.5
            # so gates i, f, o take the sigmoid branch and g takes tanh,
            # using one EUP pass over the lane-dense (B, 128) tile.
            pre_s = jnp.where(is_g_lane, pre, 0.5 * pre)
            th = jnp.tanh(pre_s)
            act = jnp.where(is_g_lane, th, 0.5 * th + 0.5)
            i_g = act[:, 0 * H:1 * H]
            f_g = act[:, 1 * H:2 * H]
            g_g = act[:, 2 * H:3 * H]
            o_g = act[:, 3 * H:4 * H]
            c = f_g * c + i_g * g_g
            h = o_g * jnp.tanh(c)
            if layer < L - 1:
                hseq_sc[t * B:(t + 1) * B, :] = h   # VMEM only, no HBM traffic

    # Fused final FC on the last timestep's hidden state (== out[:, -1, :]).
    out_ref[...] = mm(h, fc_w_ref[...]) + fc_b_ref[...]


# ----------------------------------------------------------------------------
# Wrapper: one pallas_call for the whole forward pass.
# ----------------------------------------------------------------------------
@functools.partial(jax.jit, static_argnames=("hidden_size", "num_layers"))
def robustlog_forward(features0, params, hidden_size, num_layers):
    # features0: (B, S, input_size), batch_first like the PyTorch module.
    B, S, F = features0.shape
    H = hidden_size
    # Time-major, flattened so rows [t*B:(t+1)*B] hold timestep t.
    x_flat = jnp.transpose(features0, (1, 0, 2)).astype(jnp.float32)
    x_flat = x_flat.reshape(S * B, F)

    flat_lstm = [a for layer in params["lstm"] for a in layer]
    fc_w_t, fc_b = params["fc"]
    K = fc_w_t.shape[1]

    kernel = functools.partial(
        _fused_robustlog_kernel, S=S, B=B, H=H, L=num_layers,
        mm_dtype=jnp.float32)  # use jnp.bfloat16 on v6e/v7x for MXU-native ops

    return pl.pallas_call(
        kernel,
        out_shape=jax.ShapeDtypeStruct((B, K), jnp.float32),
        scratch_shapes=[
            pltpu.VMEM((S * B, 4 * H), jnp.float32),   # hoisted x-projection
            pltpu.VMEM((S * B, H), jnp.float32),       # inter-layer hidden seq
        ],
    )(x_flat, *flat_lstm, fc_w_t, fc_b)


# ----------------------------------------------------------------------------
# Deterministic parameter construction (PyTorch-style uniform init).
# ----------------------------------------------------------------------------
def make_params(key, input_size, hidden_size, num_layers, num_keys):
    H = hidden_size
    bound = 1.0 / jnp.sqrt(H)
    params = {"lstm": []}
    for layer in range(num_layers):
        in_f = input_size if layer == 0 else H
        key, k1, k2, k3, k4 = jax.random.split(key, 5)
        w_ih = jax.random.uniform(k1, (4 * H, in_f), jnp.float32, -bound, bound)
        w_hh = jax.random.uniform(k2, (4 * H, H), jnp.float32, -bound, bound)
        b_ih = jax.random.uniform(k3, (4 * H,), jnp.float32, -bound, bound)
        b_hh = jax.random.uniform(k4, (4 * H,), jnp.float32, -bound, bound)
        # Kernel consumes transposed weights and a combined bias row.
        params["lstm"].append((w_ih.T, w_hh.T, (b_ih + b_hh)[None, :]))
    key, k5, k6 = jax.random.split(key, 3)
    fb = 1.0 / jnp.sqrt(H)
    w_fc = jax.random.uniform(k5, (num_keys, H), jnp.float32, -fb, fb)
    b_fc = jax.random.uniform(k6, (num_keys,), jnp.float32, -fb, fb)
    params["fc"] = (w_fc.T, b_fc[None, :])
    return params


# ----------------------------------------------------------------------------
# Pure-JAX reference (lax.scan) to validate the fused Pallas kernel.
# ----------------------------------------------------------------------------
def reference_forward(features0, params, hidden_size, num_layers):
    x_tm = jnp.transpose(features0, (1, 0, 2)).astype(jnp.float32)
    B = x_tm.shape[1]
    H = hidden_size
    for layer in range(num_layers):
        w_ih_t, w_hh_t, b_comb = params["lstm"][layer]

        def step(carry, x_t):
            h, c = carry
            gates = x_t @ w_ih_t + h @ w_hh_t + b_comb
            i = jax.nn.sigmoid(gates[:, 0 * H:1 * H])
            f = jax.nn.sigmoid(gates[:, 1 * H:2 * H])
            g = jnp.tanh(gates[:, 2 * H:3 * H])
            o = jax.nn.sigmoid(gates[:, 3 * H:4 * H])
            c = f * c + i * g
            h = o * jnp.tanh(c)
            return (h, c), h

        init = (jnp.zeros((B, H), jnp.float32), jnp.zeros((B, H), jnp.float32))
        _, x_tm = lax.scan(step, init, x_tm)
    w_fc_t, b_fc = params["fc"]
    return x_tm[-1] @ w_fc_t + b_fc


if __name__ == "__main__":
    input_size, hidden_size, num_layers, num_keys = 16, 32, 2, 10
    batch, seq_len = 2, 8

    key = jax.random.PRNGKey(0)
    key, pkey, xkey = jax.random.split(key, 3)
    params = make_params(pkey, input_size, hidden_size, num_layers, num_keys)
    features0 = jax.random.normal(xkey, (batch, seq_len, input_size), jnp.float32)

    out = robustlog_forward(features0, params, hidden_size, num_layers)
    out = jax.block_until_ready(out)

    ref = reference_forward(features0, params, hidden_size, num_layers)
    assert out.shape == (batch, num_keys)
    assert jnp.allclose(out, ref, atol=1e-4, rtol=1e-4), "mismatch vs reference"

    print("KERNEL_OK")
</pallas_src>

<mosaic_0001>
module attributes {stable_mosaic.version = 11 : i64} {
  func.func @_fused_robustlog_kernel(%arg0: memref<16x16xf32, #tpu.memory_space<vmem>>, %arg1: memref<16x128xf32, #tpu.memory_space<vmem>>, %arg2: memref<32x128xf32, #tpu.memory_space<vmem>>, %arg3: memref<1x128xf32, #tpu.memory_space<vmem>>, %arg4: memref<32x128xf32, #tpu.memory_space<vmem>>, %arg5: memref<32x128xf32, #tpu.memory_space<vmem>>, %arg6: memref<1x128xf32, #tpu.memory_space<vmem>>, %arg7: memref<32x10xf32, #tpu.memory_space<vmem>>, %arg8: memref<1x10xf32, #tpu.memory_space<vmem>>, %arg9: memref<2x10xf32, #tpu.memory_space<vmem>>, %arg10: memref<16x128xf32, #tpu.memory_space<vmem>>, %arg11: memref<16x32xf32, #tpu.memory_space<vmem>>) attributes {dimension_semantics = [], scalar_prefetch = 0 : i64, scratch_operands = 2 : i64, tpu.core_type = #tpu.core_type<tc>} {
    %0 = tpu.iota {dimensions = array<i32: 1>} : vector<2x128xi32>
    %c64_i32 = arith.constant 64 : i32
    %1 = vector.broadcast %c64_i32 : i32 to vector<2x128xi32>
    %2 = arith.cmpi sge, %0, %1 : vector<2x128xi32>
    %c96_i32 = arith.constant 96 : i32
    %3 = vector.broadcast %c96_i32 : i32 to vector<2x128xi32>
    %4 = arith.cmpi slt, %0, %3 : vector<2x128xi32>
    %5 = arith.andi %2, %4 : vector<2x128xi1>
    %c0 = arith.constant 0 : index
    %c0_0 = arith.constant 0 : index
    %6 = vector.load %arg0[%c0, %c0_0] : memref<16x16xf32, #tpu.memory_space<vmem>>, vector<16x16xf32>
    %c0_1 = arith.constant 0 : index
    %c0_2 = arith.constant 0 : index
    %7 = vector.load %arg1[%c0_1, %c0_2] : memref<16x128xf32, #tpu.memory_space<vmem>>, vector<16x128xf32>
    %cst = arith.constant dense<0.000000e+00> : vector<16x128xf32>
    %8 = tpu.matmul %6, %7, %cst {dimension_numbers = #tpu.dot_dimension_numbers<[1], [0], [0], [1], [0, 0, 1, 1], [], []>} : vector<16x16xf32>, vector<16x128xf32>, vector<16x128xf32> -> vector<16x128xf32>
    %c0_3 = arith.constant 0 : index
    %c0_4 = arith.constant 0 : index
    %9 = vector.load %arg3[%c0_3, %c0_4] : memref<1x128xf32, #tpu.memory_space<vmem>>, vector<1x128xf32>
    %10 = vector.broadcast %9 : vector<1x128xf32> to vector<16x128xf32>
    %11 = arith.addf %8, %10 : vector<16x128xf32>
    %c0_5 = arith.constant 0 : index
    %c0_6 = arith.constant 0 : index
    %12 = vector.load %arg10[%c0_5, %c0_6] : memref<16x128xf32, #tpu.memory_space<vmem>>, vector<16x128xf32>
    tpu.vector_store %arg10[%c0_5, %c0_6], %11 {strides = array<i32>} : memref<16x128xf32, #tpu.memory_space<vmem>>, vector<16x128xf32>,
    %c0_7 = arith.constant 0 : index
    %c0_8 = arith.constant 0 : index
    %13 = vector.load %arg2[%c0_7, %c0_8] : memref<32x128xf32, #tpu.memory_space<vmem>>, vector<32x128xf32>
    %cst_9 = arith.constant 0.000000e+00 : f32
    %14 = vector.broadcast %cst_9 : f32 to vector<2x32xf32>
    %cst_10 = arith.constant 0.000000e+00 : f32
    %15 = vector.broadcast %cst_10 : f32 to vector<2x32xf32>
    %c0_11 = arith.constant 0 : index
    %c0_12 = arith.constant 0 : index
    %16 = vector.load %arg10[%c0_11, %c0_12] : memref<16x128xf32, #tpu.memory_space<vmem>>, vector<2x128xf32>
    %cst_13 = arith.constant dense<0.000000e+00> : vector<2x128xf32>
    %17 = tpu.matmul %14, %13, %cst_13 {dimension_numbers = #tpu.dot_dimension_numbers<[1], [0], [0], [1], [0, 0, 1, 1], [], []>} : vector<2x32xf32>, vector<32x128xf32>, vector<2x128xf32> -> vector<2x128xf32>
    %18 = arith.addf %16, %17 : vector<2x128xf32>
    %cst_14 = arith.constant 5.000000e-01 : f32
    %19 = vector.broadcast %cst_14 : f32 to vector<2x128xf32>
    %20 = arith.mulf %19, %18 : vector<2x128xf32>
    %21 = arith.select %5, %18, %20 : vector<2x128xi1>, vector<2x128xf32>
    %22 = math.tanh %21 : vector<2x128xf32>
    %cst_15 = arith.constant 5.000000e-01 : f32
    %23 = vector.broadcast %cst_15 : f32 to vector<2x128xf32>
    %24 = arith.mulf %23, %22 : vector<2x128xf32>
    %cst_16 = arith.constant 5.000000e-01 : f32
    %25 = vector.broadcast %cst_16 : f32 to vector<2x128xf32>
    %26 = arith.addf %24, %25 : vector<2x128xf32>
    %27 = arith.select %5, %22, %26 : vector<2x128xi1>, vector<2x128xf32>
    %28 = vector.extract_strided_slice %27 {offsets = [0, 0], sizes = [2, 32], strides = [1, 1]} : vector<2x128xf32> to vector<2x32xf32>
    %29 = vector.extract_strided_slice %27 {offsets = [0, 32], sizes = [2, 32], strides = [1, 1]} : vector<2x128xf32> to vector<2x32xf32>
    %30 = vector.extract_strided_slice %27 {offsets = [0, 64], sizes = [2, 32], strides = [1, 1]} : vector<2x128xf32> to vector<2x32xf32>
    %31 = vector.extract_strided_slice %27 {offsets = [0, 96], sizes = [2, 32], strides = [1, 1]} : vector<2x128xf32> to vector<2x32xf32>
    %32 = arith.mulf %29, %15 : vector<2x32xf32>
    %33 = arith.mulf %28, %30 : vector<2x32xf32>
    %34 = arith.addf %32, %33 : vector<2x32xf32>
    %35 = math.tanh %34 : vector<2x32xf32>
    %36 = arith.mulf %31, %35 : vector<2x32xf32>
    %c0_17 = arith.constant 0 : index
    %c0_18 = arith.constant 0 : index
    %37 = vector.load %arg11[%c0_17, %c0_18] : memref<16x32xf32, #tpu.memory_space<vmem>>, vector<2x32xf32>
    tpu.vector_store %arg11[%c0_17, %c0_18], %36 {strides = array<i32>} : memref<16x32xf32, #tpu.memory_space<vmem>>, vector<2x32xf32>,
    %c2 = arith.constant 2 : index
    %c0_19 = arith.constant 0 : index
    %38 = vector.load %arg10[%c2, %c0_19] : memref<16x128xf32, #tpu.memory_space<vmem>>, vector<2x128xf32>
    %cst_20 = arith.constant dense<0.000000e+00> : vector<2x128xf32>
    %39 = tpu.matmul %36, %13, %cst_20 {dimension_numbers = #tpu.dot_dimension_numbers<[1], [0], [0], [1], [0, 0, 1, 1], [], []>} : vector<2x32xf32>, vector<32x128xf32>, vector<2x128xf32> -> vector<2x128xf32>
    %40 = arith.addf %38, %39 : vector<2x128xf32>
    %cst_21 = arith.constant 5.000000e-01 : f32
    %41 = vector.broadcast %cst_21 : f32 to vector<2x128xf32>
    %42 = arith.mulf %41, %40 : vector<2x128xf32>
    %43 = arith.select %5, %40, %42 : vector<2x128xi1>, vector<2x128xf32>
    %44 = math.tanh %43 : vector<2x128xf32>
    %cst_22 = arith.constant 5.000000e-01 : f32
    %45 = vector.broadcast %cst_22 : f32 to vector<2x128xf32>
    %46 = arith.mulf %45, %44 : vector<2x128xf32>
    %cst_23 = arith.constant 5.000000e-01 : f32
    %47 = vector.broadcast %cst_23 : f32 to vector<2x128xf32>
    %48 = arith.addf %46, %47 : vector<2x128xf32>
    %49 = arith.select %5, %44, %48 : vector<2x128xi1>, vector<2x128xf32>
    %50 = vector.extract_strided_slice %49 {offsets = [0, 0], sizes = [2, 32], strides = [1, 1]} : vector<2x128xf32> to vector<2x32xf32>
    %51 = vector.extract_strided_slice %49 {offsets = [0, 32], sizes = [2, 32], strides = [1, 1]} : vector<2x128xf32> to vector<2x32xf32>
    %52 = vector.extract_strided_slice %49 {offsets = [0, 64], sizes = [2, 32], strides = [1, 1]} : vector<2x128xf32> to vector<2x32xf32>
    %53 = vector.extract_strided_slice %49 {offsets = [0, 96], sizes = [2, 32], strides = [1, 1]} : vector<2x128xf32> to vector<2x32xf32>
    %54 = arith.mulf %51, %34 : vector<2x32xf32>
    %55 = arith.mulf %50, %52 : vector<2x32xf32>
    %56 = arith.addf %54, %55 : vector<2x32xf32>
    %57 = math.tanh %56 : vector<2x32xf32>
    %58 = arith.mulf %53, %57 : vector<2x32xf32>
    %c2_24 = arith.constant 2 : index
    %c0_25 = arith.constant 0 : index
    %59 = vector.load %arg11[%c2_24, %c0_25] : memref<16x32xf32, #tpu.memory_space<vmem>>, vector<2x32xf32>
    tpu.vector_store %arg11[%c2_24, %c0_25], %58 {strides = array<i32>} : memref<16x32xf32, #tpu.memory_space<vmem>>, vector<2x32xf32>,
    %c4 = arith.constant 4 : index
    %c0_26 = arith.constant 0 : index
    %60 = vector.load %arg10[%c4, %c0_26] : memref<16x128xf32, #tpu.memory_space<vmem>>, vector<2x128xf32>
    %cst_27 = arith.constant dense<0.000000e+00> : vector<2x128xf32>
    %61 = tpu.matmul %58, %13, %cst_27 {dimension_numbers = #tpu.dot_dimension_numbers<[1], [0], [0], [1], [0, 0, 1, 1], [], []>} : vector<2x32xf32>, vector<32x128xf32>, vector<2x128xf32> -> vector<2x128xf32>
    %62 = arith.addf %60, %61 : vector<2x128xf32>
    %cst_28 = arith.constant 5.000000e-01 : f32
    %63 = vector.broadcast %cst_28 : f32 to vector<2x128xf32>
    %64 = arith.mulf %63, %62 : vector<2x128xf32>
    %65 = arith.select %5, %62, %64 : vector<2x128xi1>, vector<2x128xf32>
    %66 = math.tanh %65 : vector<2x128xf32>
    %cst_29 = arith.constant 5.000000e-01 : f32
    %67 = vector.broadcast %cst_29 : f32 to vector<2x128xf32>
    %68 = arith.mulf %67, %66 : vector<2x128xf32>
    %cst_30 = arith.constant 5.000000e-01 : f32
    %69 = vector.broadcast %cst_30 : f32 to vector<2x128xf32>
    %70 = arith.addf %68, %69 : vector<2x128xf32>
    %71 = arith.select %5, %66, %70 : vector<2x128xi1>, vector<2x128xf32>
    %72 = vector.extract_strided_slice %71 {offsets = [0, 0], sizes = [2, 32], strides = [1, 1]} : vector<2x128xf32> to vector<2x32xf32>
    %73 = vector.extract_strided_slice %71 {offsets = [0, 32], sizes = [2, 32], strides = [1, 1]} : vector<2x128xf32> to vector<2x32xf32>
    %74 = vector.extract_strided_slice %71 {offsets = [0, 64], sizes = [2, 32], strides = [1, 1]} : vector<2x128xf32> to vector<2x32xf32>
    %75 = vector.extract_strided_slice %71 {offsets = [0, 96], sizes = [2, 32], strides = [1, 1]} : vector<2x128xf32> to vector<2x32xf32>
    %76 = arith.mulf %73, %56 : vector<2x32xf32>
    %77 = arith.mulf %72, %74 : vector<2x32xf32>
    %78 = arith.addf %76, %77 : vector<2x32xf32>
    %79 = math.tanh %78 : vector<2x32xf32>
    %80 = arith.mulf %75, %79 : vector<2x32xf32>
    %c4_31 = arith.constant 4 : index
    %c0_32 = arith.constant 0 : index
    %81 = vector.load %arg11[%c4_31, %c0_32] : memref<16x32xf32, #tpu.memory_space<vmem>>, vector<2x32xf32>
    tpu.vector_store %arg11[%c4_31, %c0_32], %80 {strides = array<i32>} : memref<16x32xf32, #tpu.memory_space<vmem>>, vector<2x32xf32>,
    %c6 = arith.constant 6 : index
    %c0_33 = arith.constant 0 : index
    %82 = vector.load %arg10[%c6, %c0_33] : memref<16x128xf32, #tpu.memory_space<vmem>>, vector<2x128xf32>
    %cst_34 = arith.constant dense<0.000000e+00> : vector<2x128xf32>
    %83 = tpu.matmul %80, %13, %cst_34 {dimension_numbers = #tpu.dot_dimension_numbers<[1], [0], [0], [1], [0, 0, 1, 1], [], []>} : vector<2x32xf32>, vector<32x128xf32>, vector<2x128xf32> -> vector<2x128xf32>
    %84 = arith.addf %82, %83 : vector<2x128xf32>
    %cst_35 = arith.constant 5.000000e-01 : f32
    %85 = vector.broadcast %cst_35 : f32 to vector<2x128xf32>
    %86 = arith.mulf %85, %84 : vector<2x128xf32>
    %87 = arith.select %5, %84, %86 : vector<2x128xi1>, vector<2x128xf32>
    %88 = math.tanh %87 : vector<2x128xf32>
    %cst_36 = arith.constant 5.000000e-01 : f32
    %89 = vector.broadcast %cst_36 : f32 to vector<2x128xf32>
    %90 = arith.mulf %89, %88 : vector<2x128xf32>
    %cst_37 = arith.constant 5.000000e-01 : f32
    %91 = vector.broadcast %cst_37 : f32 to vector<2x128xf32>
    %92 = arith.addf %90, %91 : vector<2x128xf32>
    %93 = arith.select %5, %88, %92 : vector<2x128xi1>, vector<2x128xf32>
    %94 = vector.extract_strided_slice %93 {offsets = [0, 0], sizes = [2, 32], strides = [1, 1]} : vector<2x128xf32> to vector<2x32xf32>
    %95 = vector.extract_strided_slice %93 {offsets = [0, 32], sizes = [2, 32], strides = [1, 1]} : vector<2x128xf32> to vector<2x32xf32>
    %96 = vector.extract_strided_slice %93 {offsets = [0, 64], sizes = [2, 32], strides = [1, 1]} : vector<2x128xf32> to vector<2x32xf32>
    %97 = vector.extract_strided_slice %93 {offsets = [0, 96], sizes = [2, 32], strides = [1, 1]} : vector<2x128xf32> to vector<2x32xf32>
    %98 = arith.mulf %95, %78 : vector<2x32xf32>
    %99 = arith.mulf %94, %96 : vector<2x32xf32>
    %100 = arith.addf %98, %99 : vector<2x32xf32>
    %101 = math.tanh %100 : vector<2x32xf32>
    %102 = arith.mulf %97, %101 : vector<2x32xf32>
    %c6_38 = arith.constant 6 : index
    %c0_39 = arith.constant 0 : index
    %103 = vector.load %arg11[%c6_38, %c0_39] : memref<16x32xf32, #tpu.memory_space<vmem>>, vector<2x32xf32>
    tpu.vector_store %arg11[%c6_38, %c0_39], %102 {strides = array<i32>} : memref<16x32xf32, #tpu.memory_space<vmem>>, vector<2x32xf32>,
    %c8 = arith.constant 8 : index
    %c0_40 = arith.constant 0 : index
    %104 = vector.load %arg10[%c8, %c0_40] : memref<16x128xf32, #tpu.memory_space<vmem>>, vector<2x128xf32>
    %cst_41 = arith.constant dense<0.000000e+00> : vector<2x128xf32>
    %105 = tpu.matmul %102, %13, %cst_41 {dimension_numbers = #tpu.dot_dimension_numbers<[1], [0], [0], [1], [0, 0, 1, 1], [], []>} : vector<2x32xf32>, vector<32x128xf32>, vector<2x128xf32> -> vector<2x128xf32>
    %106 = arith.addf %104, %105 : vector<2x128xf32>
    %cst_42 = arith.constant 5.000000e-01 : f32
    %107 = vector.broadcast %cst_42 : f32 to vector<2x128xf32>
    %108 = arith.mulf %107, %106 : vector<2x128xf32>
    %109 = arith.select %5, %106, %108 : vector<2x128xi1>, vector<2x128xf32>
    %110 = math.tanh %109 : vector<2x128xf32>
    %cst_43 = arith.constant 5.000000e-01 : f32
    %111 = vector.broadcast %cst_43 : f32 to vector<2x128xf32>
    %112 = arith.mulf %111, %110 : vector<2x128xf32>
    %cst_44 = arith.constant 5.000000e-01 : f32
    %113 = vector.broadcast %cst_44 : f32 to vector<2x128xf32>
    %114 = arith.addf %112, %113 : vector<2x128xf32>
    %115 = arith.select %5, %110, %114 : vector<2x128xi1>, vector<2x128xf32>
    %116 = vector.extract_strided_slice %115 {offsets = [0, 0], sizes = [2, 32], strides = [1, 1]} : vector<2x128xf32> to vector<2x32xf32>
    %117 = vector.extract_strided_slice %115 {offsets = [0, 32], sizes = [2, 32], strides = [1, 1]} : vector<2x128xf32> to vector<2x32xf32>
    %118 = vector.extract_strided_slice %115 {offsets = [0, 64], sizes = [2, 32], strides = [1, 1]} : vector<2x128xf32> to vector<2x32xf32>
    %119 = vector.extract_strided_slice %115 {offsets = [0, 96], sizes = [2, 32], strides = [1, 1]} : vector<2x128xf32> to vector<2x32xf32>
    %120 = arith.mulf %117, %100 : vector<2x32xf32>
    %121 = arith.mulf %116, %118 : vector<2x32xf32>
    %122 = arith.addf %120, %121 : vector<2x32xf32>
    %123 = math.tanh %122 : vector<2x32xf32>
    %124 = arith.mulf %119, %123 : vector<2x32xf32>
    %c8_45 = arith.constant 8 : index
    %c0_46 = arith.constant 0 : index
    %125 = vector.load %arg11[%c8_45, %c0_46] : memref<16x32xf32, #tpu.memory_space<vmem>>, vector<2x32xf32>
    tpu.vector_store %arg11[%c8_45, %c0_46], %124 {strides = array<i32>} : memref<16x32xf32, #tpu.memory_space<vmem>>, vector<2x32xf32>,
    %c10 = arith.constant 10 : index
    %c0_47 = arith.constant 0 : index
    %126 = vector.load %arg10[%c10, %c0_47] : memref<16x128xf32, #tpu.memory_space<vmem>>, vector<2x128xf32>
    %cst_48 = arith.constant dense<0.000000e+00> : vector<2x128xf32>
    %127 = tpu.matmul %124, %13, %cst_48 {dimension_numbers = #tpu.dot_dimension_numbers<[1], [0], [0], [1], [0, 0, 1, 1], [], []>} : vector<2x32xf32>, vector<32x128xf32>, vector<2x128xf32> -> vector<2x128xf32>
    %128 = arith.addf %126, %127 : vector<2x128xf32>
    %cst_49 = arith.constant 5.000000e-01 : f32
    %129 = vector.broadcast %cst_49 : f32 to vector<2x128xf32>
    %130 = arith.mulf %129, %128 : vector<2x128xf32>
    %131 = arith.select %5, %128, %130 : vector<2x128xi1>, vector<2x128xf32>
    %132 = math.tanh %131 : vector<2x128xf32>
    %cst_50 = arith.constant 5.000000e-01 : f32
    %133 = vector.broadcast %cst_50 : f32 to vector<2x128xf32>
    %134 = arith.mulf %133, %132 : vector<2x128xf32>
    %cst_51 = arith.constant 5.000000e-01 : f32
    %135 = vector.broadcast %cst_51 : f32 to vector<2x128xf32>
    %136 = arith.addf %134, %135 : vector<2x128xf32>
    %137 = arith.select %5, %132, %136 : vector<2x128xi1>, vector<2x128xf32>
    %138 = vector.extract_strided_slice %137 {offsets = [0, 0], sizes = [2, 32], strides = [1, 1]} : vector<2x128xf32> to vector<2x32xf32>
    %139 = vector.extract_strided_slice %137 {offsets = [0, 32], sizes = [2, 32], strides = [1, 1]} : vector<2x128xf32> to vector<2x32xf32>
    %140 = vector.extract_strided_slice %137 {offsets = [0, 64], sizes = [2, 32], strides = [1, 1]} : vector<2x128xf32> to vector<2x32xf32>
    %141 = vector.extract_strided_slice %137 {offsets = [0, 96], sizes = [2, 32], strides = [1, 1]} : vector<2x128xf32> to vector<2x32xf32>
    %142 = arith.mulf %139, %122 : vector<2x32xf32>
    %143 = arith.mulf %138, %140 : vector<2x32xf32>
    %144 = arith.addf %142, %143 : vector<2x32xf32>
    %145 = math.tanh %144 : vector<2x32xf32>
    %146 = arith.mulf %141, %145 : vector<2x32xf32>
    %c10_52 = arith.constant 10 : index
    %c0_53 = arith.constant 0 : index
    %147 = vector.load %arg11[%c10_52, %c0_53] : memref<16x32xf32, #tpu.memory_space<vmem>>, vector<2x32xf32>
    tpu.vector_store %arg11[%c10_52, %c0_53], %146 {strides = array<i32>} : memref<16x32xf32, #tpu.memory_space<vmem>>, vector<2x32xf32>,
    %c12 = arith.constant 12 : index
    %c0_54 = arith.constant 0 : index
    %148 = vector.load %arg10[%c12, %c0_54] : memref<16x128xf32, #tpu.memory_space<vmem>>, vector<2x128xf32>
    %cst_55 = arith.constant dense<0.000000e+00> : vector<2x128xf32>
    %149 = tpu.matmul %146, %13, %cst_55 {dimension_numbers = #tpu.dot_dimension_numbers<[1], [0], [0], [1], [0, 0, 1, 1], [], []>} : vector<2x32xf32>, vector<32x128xf32>, vector<2x128xf32> -> vector<2x128xf32>
    %150 = arith.addf %148, %149 : vector<2x128xf32>
    %cst_56 = arith.constant 5.000000e-01 : f32
    %151 = vector.broadcast %cst_56 : f32 to vector<2x128xf32>
    %152 = arith.mulf %151, %150 : vector<2x128xf32>
    %153 = arith.select %5, %150, %152 : vector<2x128xi1>, vector<2x128xf32>
    %154 = math.tanh %153 : vector<2x128xf32>
    %cst_57 = arith.constant 5.000000e-01 : f32
    %155 = vector.broadcast %cst_57 : f32 to vector<2x128xf32>
    %156 = arith.mulf %155, %154 : vector<2x128xf32>
    %cst_58 = arith.constant 5.000000e-01 : f32
    %157 = vector.broadcast %cst_58 : f32 to vector<2x128xf32>
    %158 = arith.addf %156, %157 : vector<2x128xf32>
    %159 = arith.select %5, %154, %158 : vector<2x128xi1>, vector<2x128xf32>
    %160 = vector.extract_strided_slice %159 {offsets = [0, 0], sizes = [2, 32], strides = [1, 1]} : vector<2x128xf32> to vector<2x32xf32>
    %161 = vector.extract_strided_slice %159 {offsets = [0, 32], sizes = [2, 32], strides = [1, 1]} : vector<2x128xf32> to vector<2x32xf32>
    %162 = vector.extract_strided_slice %159 {offsets = [0, 64], sizes = [2, 32], strides = [1, 1]} : vector<2x128xf32> to vector<2x32xf32>
    %163 = vector.extract_strided_slice %159 {offsets = [0, 96], sizes = [2, 32], strides = [1, 1]} : vector<2x128xf32> to vector<2x32xf32>
    %164 = arith.mulf %161, %144 : vector<2x32xf32>
    %165 = arith.mulf %160, %162 : vector<2x32xf32>
    %166 = arith.addf %164, %165 : vector<2x32xf32>
    %167 = math.tanh %166 : vector<2x32xf32>
    %168 = arith.mulf %163, %167 : vector<2x32xf32>
    %c12_59 = arith.constant 12 : index
    %c0_60 = arith.constant 0 : index
    %169 = vector.load %arg11[%c12_59, %c0_60] : memref<16x32xf32, #tpu.memory_space<vmem>>, vector<2x32xf32>
    tpu.vector_store %arg11[%c12_59, %c0_60], %168 {strides = array<i32>} : memref<16x32xf32, #tpu.memory_space<vmem>>, vector<2x32xf32>,
    %c14 = arith.constant 14 : index
    %c0_61 = arith.constant 0 : index
    %170 = vector.load %arg10[%c14, %c0_61] : memref<16x128xf32, #tpu.memory_space<vmem>>, vector<2x128xf32>
    %cst_62 = arith.constant dense<0.000000e+00> : vector<2x128xf32>
    %171 = tpu.matmul %168, %13, %cst_62 {dimension_numbers = #tpu.dot_dimension_numbers<[1], [0], [0], [1], [0, 0, 1, 1], [], []>} : vector<2x32xf32>, vector<32x128xf32>, vector<2x128xf32> -> vector<2x128xf32>
    %172 = arith.addf %170, %171 : vector<2x128xf32>
    %cst_63 = arith.constant 5.000000e-01 : f32
    %173 = vector.broadcast %cst_63 : f32 to vector<2x128xf32>
    %174 = arith.mulf %173, %172 : vector<2x128xf32>
    %175 = arith.select %5, %172, %174 : vector<2x128xi1>, vector<2x128xf32>
    %176 = math.tanh %175 : vector<2x128xf32>
    %cst_64 = arith.constant 5.000000e-01 : f32
    %177 = vector.broadcast %cst_64 : f32 to vector<2x128xf32>
    %178 = arith.mulf %177, %176 : vector<2x128xf32>
    %cst_65 = arith.constant 5.000000e-01 : f32
    %179 = vector.broadcast %cst_65 : f32 to vector<2x128xf32>
    %180 = arith.addf %178, %179 : vector<2x128xf32>
    %181 = arith.select %5, %176, %180 : vector<2x128xi1>, vector<2x128xf32>
    %182 = vector.extract_strided_slice %181 {offsets = [0, 0], sizes = [2, 32], strides = [1, 1]} : vector<2x128xf32> to vector<2x32xf32>
    %183 = vector.extract_strided_slice %181 {offsets = [0, 32], sizes = [2, 32], strides = [1, 1]} : vector<2x128xf32> to vector<2x32xf32>
    %184 = vector.extract_strided_slice %181 {offsets = [0, 64], sizes = [2, 32], strides = [1, 1]} : vector<2x128xf32> to vector<2x32xf32>
    %185 = vector.extract_strided_slice %181 {offsets = [0, 96], sizes = [2, 32], strides = [1, 1]} : vector<2x128xf32> to vector<2x32xf32>
    %186 = arith.mulf %183, %166 : vector<2x32xf32>
    %187 = arith.mulf %182, %184 : vector<2x32xf32>
    %188 = arith.addf %186, %187 : vector<2x32xf32>
    %189 = math.tanh %188 : vector<2x32xf32>
    %190 = arith.mulf %185, %189 : vector<2x32xf32>
    %c14_66 = arith.constant 14 : index
    %c0_67 = arith.constant 0 : index
    %191 = vector.load %arg11[%c14_66, %c0_67] : memref<16x32xf32, #tpu.memory_space<vmem>>, vector<2x32xf32>
    tpu.vector_store %arg11[%c14_66, %c0_67], %190 {strides = array<i32>} : memref<16x32xf32, #tpu.memory_space<vmem>>, vector<2x32xf32>,
    %c0_68 = arith.constant 0 : index
    %c0_69 = arith.constant 0 : index
    %192 = vector.load %arg11[%c0_68, %c0_69] : memref<16x32xf32, #tpu.memory_space<vmem>>, vector<16x32xf32>
    %c0_70 = arith.constant 0 : index
    %c0_71 = arith.constant 0 : index
    %193 = vector.load %arg4[%c0_70, %c0_71] : memref<32x128xf32, #tpu.memory_space<vmem>>, vector<32x128xf32>
    %cst_72 = arith.constant dense<0.000000e+00> : vector<16x128xf32>
    %194 = tpu.matmul %192, %193, %cst_72 {dimension_numbers = #tpu.dot_dimension_numbers<[1], [0], [0], [1], [0, 0, 1, 1], [], []>} : vector<16x32xf32>, vector<32x128xf32>, vector<16x128xf32> -> vector<16x128xf32>
    %c0_73 = arith.constant 0 : index
    %c0_74 = arith.constant 0 : index
    %195 = vector.load %arg6[%c0_73, %c0_74] : memref<1x128xf32, #tpu.memory_space<vmem>>, vector<1x128xf32>
    %196 = vector.broadcast %195 : vector<1x128xf32> to vector<16x128xf32>
    %197 = arith.addf %194, %196 : vector<16x128xf32>
    %c0_75 = arith.constant 0 : index
    %c0_76 = arith.constant 0 : index
    %198 = vector.load %arg10[%c0_75, %c0_76] : memref<16x128xf32, #tpu.memory_space<vmem>>, vector<16x128xf32>
    tpu.vector_store %arg10[%c0_75, %c0_76], %197 {strides = array<i32>} : memref<16x128xf32, #tpu.memory_space<vmem>>, vector<16x128xf32>,
    %c0_77 = arith.constant 0 : index
    %c0_78 = arith.constant 0 : index
    %199 = vector.load %arg5[%c0_77, %c0_78] : memref<32x128xf32, #tpu.memory_space<vmem>>, vector<32x128xf32>
    %cst_79 = arith.constant 0.000000e+00 : f32
    %200 = vector.broadcast %cst_79 : f32 to vector<2x32xf32>
    %cst_80 = arith.constant 0.000000e+00 : f32
    %201 = vector.broadcast %cst_80 : f32 to vector<2x32xf32>
    %c0_81 = arith.constant 0 : index
    %c0_82 = arith.constant 0 : index
    %202 = vector.load %arg10[%c0_81, %c0_82] : memref<16x128xf32, #tpu.memory_space<vmem>>, vector<2x128xf32>
    %cst_83 = arith.constant dense<0.000000e+00> : vector<2x128xf32>
    %203 = tpu.matmul %200, %199, %cst_83 {dimension_numbers = #tpu.dot_dimension_numbers<[1], [0], [0], [1], [0, 0, 1, 1], [], []>} : vector<2x32xf32>, vector<32x128xf32>, vector<2x128xf32> -> vector<2x128xf32>
    %204 = arith.addf %202, %203 : vector<2x128xf32>
    %cst_84 = arith.constant 5.000000e-01 : f32
    %205 = vector.broadcast %cst_84 : f32 to vector<2x128xf32>
    %206 = arith.mulf %205, %204 : vector<2x128xf32>
    %207 = arith.select %5, %204, %206 : vector<2x128xi1>, vector<2x128xf32>
    %208 = math.tanh %207 : vector<2x128xf32>
    %cst_85 = arith.constant 5.000000e-01 : f32
    %209 = vector.broadcast %cst_85 : f32 to vector<2x128xf32>
    %210 = arith.mulf %209, %208 : vector<2x128xf32>
    %cst_86 = arith.constant 5.000000e-01 : f32
    %211 = vector.broadcast %cst_86 : f32 to vector<2x128xf32>
    %212 = arith.addf %210, %211 : vector<2x128xf32>
    %213 = arith.select %5, %208, %212 : vector<2x128xi1>, vector<2x128xf32>
    %214 = vector.extract_strided_slice %213 {offsets = [0, 0], sizes = [2, 32], strides = [1, 1]} : vector<2x128xf32> to vector<2x32xf32>
    %215 = vector.extract_strided_slice %213 {offsets = [0, 32], sizes = [2, 32], strides = [1, 1]} : vector<2x128xf32> to vector<2x32xf32>
    %216 = vector.extract_strided_slice %213 {offsets = [0, 64], sizes = [2, 32], strides = [1, 1]} : vector<2x128xf32> to vector<2x32xf32>
    %217 = vector.extract_strided_slice %213 {offsets = [0, 96], sizes = [2, 32], strides = [1, 1]} : vector<2x128xf32> to vector<2x32xf32>
    %218 = arith.mulf %215, %201 : vector<2x32xf32>
    %219 = arith.mulf %214, %216 : vector<2x32xf32>
    %220 = arith.addf %218, %219 : vector<2x32xf32>
    %221 = math.tanh %220 : vector<2x32xf32>
    %222 = arith.mulf %217, %221 : vector<2x32xf32>
    %c2_87 = arith.constant 2 : index
    %c0_88 = arith.constant 0 : index
    %223 = vector.load %arg10[%c2_87, %c0_88] : memref<16x128xf32, #tpu.memory_space<vmem>>, vector<2x128xf32>
    %cst_89 = arith.constant dense<0.000000e+00> : vector<2x128xf32>
    %224 = tpu.matmul %222, %199, %cst_89 {dimension_numbers = #tpu.dot_dimension_numbers<[1], [0], [0], [1], [0, 0, 1, 1], [], []>} : vector<2x32xf32>, vector<32x128xf32>, vector<2x128xf32> -> vector<2x128xf32>
    %225 = arith.addf %223, %224 : vector<2x128xf32>
    %cst_90 = arith.constant 5.000000e-01 : f32
    %226 = vector.broadcast %cst_90 : f32 to vector<2x128xf32>
    %227 = arith.mulf %226, %225 : vector<2x128xf32>
    %228 = arith.select %5, %225, %227 : vector<2x128xi1>, vector<2x128xf32>
    %229 = math.tanh %228 : vector<2x128xf32>
    %cst_91 = arith.constant 5.000000e-01 : f32
    %230 = vector.broadcast %cst_91 : f32 to vector<2x128xf32>
    %231 = arith.mulf %230, %229 : vector<2x128xf32>
    %cst_92 = arith.constant 5.000000e-01 : f32
    %232 = vector.broadcast %cst_92 : f32 to vector<2x128xf32>
    %233 = arith.addf %231, %232 : vector<2x128xf32>
    %234 = arith.select %5, %229, %233 : vector<2x128xi1>, vector<2x128xf32>
    %235 = vector.extract_strided_slice %234 {offsets = [0, 0], sizes = [2, 32], strides = [1, 1]} : vector<2x128xf32> to vector<2x32xf32>
    %236 = vector.extract_strided_slice %234 {offsets = [0, 32], sizes = [2, 32], strides = [1, 1]} : vector<2x128xf32> to vector<2x32xf32>
    %237 = vector.extract_strided_slice %234 {offsets = [0, 64], sizes = [2, 32], strides = [1, 1]} : vector<2x128xf32> to vector<2x32xf32>
    %238 = vector.extract_strided_slice %234 {offsets = [0, 96], sizes = [2, 32], strides = [1, 1]} : vector<2x128xf32> to vector<2x32xf32>
    %239 = arith.mulf %236, %220 : vector<2x32xf32>
    %240 = arith.mulf %235, %237 : vector<2x32xf32>
    %241 = arith.addf %239, %240 : vector<2x32xf32>
    %242 = math.tanh %241 : vector<2x32xf32>
    %243 = arith.mulf %238, %242 : vector<2x32xf32>
    %c4_93 = arith.constant 4 : index
    %c0_94 = arith.constant 0 : index
    %244 = vector.load %arg10[%c4_93, %c0_94] : memref<16x128xf32, #tpu.memory_space<vmem>>, vector<2x128xf32>
    %cst_95 = arith.constant dense<0.000000e+00> : vector<2x128xf32>
    %245 = tpu.matmul %243, %199, %cst_95 {dimension_numbers = #tpu.dot_dimension_numbers<[1], [0], [0], [1], [0, 0, 1, 1], [], []>} : vector<2x32xf32>, vector<32x128xf32>, vector<2x128xf32> -> vector<2x128xf32>
    %246 = arith.addf %244, %245 : vector<2x128xf32>
    %cst_96 = arith.constant 5.000000e-01 : f32
    %247 = vector.broadcast %cst_96 : f32 to vector<2x128xf32>
    %248 = arith.mulf %247, %246 : vector<2x128xf32>
    %249 = arith.select %5, %246, %248 : vector<2x128xi1>, vector<2x128xf32>
    %250 = math.tanh %249 : vector<2x128xf32>
    %cst_97 = arith.constant 5.000000e-01 : f32
    %251 = vector.broadcast %cst_97 : f32 to vector<2x128xf32>
    %252 = arith.mulf %251, %250 : vector<2x128xf32>
    %cst_98 = arith.constant 5.000000e-01 : f32
    %253 = vector.broadcast %cst_98 : f32 to vector<2x128xf32>
    %254 = arith.addf %252, %253 : vector<2x128xf32>
    %255 = arith.select %5, %250, %254 : vector<2x128xi1>, vector<2x128xf32>
    %256 = vector.extract_strided_slice %255 {offsets = [0, 0], sizes = [2, 32], strides = [1, 1]} : vector<2x128xf32> to vector<2x32xf32>
    %257 = vector.extract_strided_slice %255 {offsets = [0, 32], sizes = [2, 32], strides = [1, 1]} : vector<2x128xf32> to vector<2x32xf32>
    %258 = vector.extract_strided_slice %255 {offsets = [0, 64], sizes = [2, 32], strides = [1, 1]} : vector<2x128xf32> to vector<2x32xf32>
    %259 = vector.extract_strided_slice %255 {offsets = [0, 96], sizes = [2, 32], strides = [1, 1]} : vector<2x128xf32> to vector<2x32xf32>
    %260 = arith.mulf %257, %241 : vector<2x32xf32>
    %261 = arith.mulf %256, %258 : vector<2x32xf32>
    %262 = arith.addf %260, %261 : vector<2x32xf32>
    %263 = math.tanh %262 : vector<2x32xf32>
    %264 = arith.mulf %259, %263 : vector<2x32xf32>
    %c6_99 = arith.constant 6 : index
    %c0_100 = arith.constant 0 : index
    %265 = vector.load %arg10[%c6_99, %c0_100] : memref<16x128xf32, #tpu.memory_space<vmem>>, vector<2x128xf32>
    %cst_101 = arith.constant dense<0.000000e+00> : vector<2x128xf32>
    %266 = tpu.matmul %264, %199, %cst_101 {dimension_numbers = #tpu.dot_dimension_numbers<[1], [0], [0], [1], [0, 0, 1, 1], [], []>} : vector<2x32xf32>, vector<32x128xf32>, vector<2x128xf32> -> vector<2x128xf32>
    %267 = arith.addf %265, %266 : vector<2x128xf32>
    %cst_102 = arith.constant 5.000000e-01 : f32
    %268 = vector.broadcast %cst_102 : f32 to vector<2x128xf32>
    %269 = arith.mulf %268, %267 : vector<2x128xf32>
    %270 = arith.select %5, %267, %269 : vector<2x128xi1>, vector<2x128xf32>
    %271 = math.tanh %270 : vector<2x128xf32>
    %cst_103 = arith.constant 5.000000e-01 : f32
    %272 = vector.broadcast %cst_103 : f32 to vector<2x128xf32>
    %273 = arith.mulf %272, %271 : vector<2x128xf32>
    %cst_104 = arith.constant 5.000000e-01 : f32
    %274 = vector.broadcast %cst_104 : f32 to vector<2x128xf32>
    %275 = arith.addf %273, %274 : vector<2x128xf32>
    %276 = arith.select %5, %271, %275 : vector<2x128xi1>, vector<2x128xf32>
    %277 = vector.extract_strided_slice %276 {offsets = [0, 0], sizes = [2, 32], strides = [1, 1]} : vector<2x128xf32> to vector<2x32xf32>
    %278 = vector.extract_strided_slice %276 {offsets = [0, 32], sizes = [2, 32], strides = [1, 1]} : vector<2x128xf32> to vector<2x32xf32>
    %279 = vector.extract_strided_slice %276 {offsets = [0, 64], sizes = [2, 32], strides = [1, 1]} : vector<2x128xf32> to vector<2x32xf32>
    %280 = vector.extract_strided_slice %276 {offsets = [0, 96], sizes = [2, 32], strides = [1, 1]} : vector<2x128xf32> to vector<2x32xf32>
    %281 = arith.mulf %278, %262 : vector<2x32xf32>
    %282 = arith.mulf %277, %279 : vector<2x32xf32>
    %283 = arith.addf %281, %282 : vector<2x32xf32>
    %284 = math.tanh %283 : vector<2x32xf32>
    %285 = arith.mulf %280, %284 : vector<2x32xf32>
    %c8_105 = arith.constant 8 : index
    %c0_106 = arith.constant 0 : index
    %286 = vector.load %arg10[%c8_105, %c0_106] : memref<16x128xf32, #tpu.memory_space<vmem>>, vector<2x128xf32>
    %cst_107 = arith.constant dense<0.000000e+00> : vector<2x128xf32>
    %287 = tpu.matmul %285, %199, %cst_107 {dimension_numbers = #tpu.dot_dimension_numbers<[1], [0], [0], [1], [0, 0, 1, 1], [], []>} : vector<2x32xf32>, vector<32x128xf32>, vector<2x128xf32> -> vector<2x128xf32>
    %288 = arith.addf %286, %287 : vector<2x128xf32>
    %cst_108 = arith.constant 5.000000e-01 : f32
    %289 = vector.broadcast %cst_108 : f32 to vector<2x128xf32>
    %290 = arith.mulf %289, %288 : vector<2x128xf32>
    %291 = arith.select %5, %288, %290 : vector<2x128xi1>, vector<2x128xf32>
    %292 = math.tanh %291 : vector<2x128xf32>
    %cst_109 = arith.constant 5.000000e-01 : f32
    %293 = vector.broadcast %cst_109 : f32 to vector<2x128xf32>
    %294 = arith.mulf %293, %292 : vector<2x128xf32>
    %cst_110 = arith.constant 5.000000e-01 : f32
    %295 = vector.broadcast %cst_110 : f32 to vector<2x128xf32>
    %296 = arith.addf %294, %295 : vector<2x128xf32>
    %297 = arith.select %5, %292, %296 : vector<2x128xi1>, vector<2x128xf32>
    %298 = vector.extract_strided_slice %297 {offsets = [0, 0], sizes = [2, 32], strides = [1, 1]} : vector<2x128xf32> to vector<2x32xf32>
    %299 = vector.extract_strided_slice %297 {offsets = [0, 32], sizes = [2, 32], strides = [1, 1]} : vector<2x128xf32> to vector<2x32xf32>
    %300 = vector.extract_strided_slice %297 {offsets = [0, 64], sizes = [2, 32], strides = [1, 1]} : vector<2x128xf32> to vector<2x32xf32>
    %301 = vector.extract_strided_slice %297 {offsets = [0, 96], sizes = [2, 32], strides = [1, 1]} : vector<2x128xf32> to vector<2x32xf32>
    %302 = arith.mulf %299, %283 : vector<2x32xf32>
    %303 = arith.mulf %298, %300 : vector<2x32xf32>
    %304 = arith.addf %302, %303 : vector<2x32xf32>
    %305 = math.tanh %304 : vector<2x32xf32>
    %306 = arith.mulf %301, %305 : vector<2x32xf32>
    %c10_111 = arith.constant 10 : index
    %c0_112 = arith.constant 0 : index
    %307 = vector.load %arg10[%c10_111, %c0_112] : memref<16x128xf32, #tpu.memory_space<vmem>>, vector<2x128xf32>
    %cst_113 = arith.constant dense<0.000000e+00> : vector<2x128xf32>
    %308 = tpu.matmul %306, %199, %cst_113 {dimension_numbers = #tpu.dot_dimension_numbers<[1], [0], [0], [1], [0, 0, 1, 1], [], []>} : vector<2x32xf32>, vector<32x128xf32>, vector<2x128xf32> -> vector<2x128xf32>
    %309 = arith.addf %307, %308 : vector<2x128xf32>
    %cst_114 = arith.constant 5.000000e-01 : f32
    %310 = vector.broadcast %cst_114 : f32 to vector<2x128xf32>
    %311 = arith.mulf %310, %309 : vector<2x128xf32>
    %312 = arith.select %5, %309, %311 : vector<2x128xi1>, vector<2x128xf32>
    %313 = math.tanh %312 : vector<2x128xf32>
    %cst_115 = arith.constant 5.000000e-01 : f32
    %314 = vector.broadcast %cst_115 : f32 to vector<2x128xf32>
    %315 = arith.mulf %314, %313 : vector<2x128xf32>
    %cst_116 = arith.constant 5.000000e-01 : f32
    %316 = vector.broadcast %cst_116 : f32 to vector<2x128xf32>
    %317 = arith.addf %315, %316 : vector<2x128xf32>
    %318 = arith.select %5, %313, %317 : vector<2x128xi1>, vector<2x128xf32>
    %319 = vector.extract_strided_slice %318 {offsets = [0, 0], sizes = [2, 32], strides = [1, 1]} : vector<2x128xf32> to vector<2x32xf32>
    %320 = vector.extract_strided_slice %318 {offsets = [0, 32], sizes = [2, 32], strides = [1, 1]} : vector<2x128xf32> to vector<2x32xf32>
    %321 = vector.extract_strided_slice %318 {offsets = [0, 64], sizes = [2, 32], strides = [1, 1]} : vector<2x128xf32> to vector<2x32xf32>
    %322 = vector.extract_strided_slice %318 {offsets = [0, 96], sizes = [2, 32], strides = [1, 1]} : vector<2x128xf32> to vector<2x32xf32>
    %323 = arith.mulf %320, %304 : vector<2x32xf32>
    %324 = arith.mulf %319, %321 : vector<2x32xf32>
    %325 = arith.addf %323, %324 : vector<2x32xf32>
    %326 = math.tanh %325 : vector<2x32xf32>
    %327 = arith.mulf %322, %326 : vector<2x32xf32>
    %c12_117 = arith.constant 12 : index
    %c0_118 = arith.constant 0 : index
    %328 = vector.load %arg10[%c12_117, %c0_118] : memref<16x128xf32, #tpu.memory_space<vmem>>, vector<2x128xf32>
    %cst_119 = arith.constant dense<0.000000e+00> : vector<2x128xf32>
    %329 = tpu.matmul %327, %199, %cst_119 {dimension_numbers = #tpu.dot_dimension_numbers<[1], [0], [0], [1], [0, 0, 1, 1], [], []>} : vector<2x32xf32>, vector<32x128xf32>, vector<2x128xf32> -> vector<2x128xf32>
    %330 = arith.addf %328, %329 : vector<2x128xf32>
    %cst_120 = arith.constant 5.000000e-01 : f32
    %331 = vector.broadcast %cst_120 : f32 to vector<2x128xf32>
    %332 = arith.mulf %331, %330 : vector<2x128xf32>
    %333 = arith.select %5, %330, %332 : vector<2x128xi1>, vector<2x128xf32>
    %334 = math.tanh %333 : vector<2x128xf32>
    %cst_121 = arith.constant 5.000000e-01 : f32
    %335 = vector.broadcast %cst_121 : f32 to vector<2x128xf32>
    %336 = arith.mulf %335, %334 : vector<2x128xf32>
    %cst_122 = arith.constant 5.000000e-01 : f32
    %337 = vector.broadcast %cst_122 : f32 to vector<2x128xf32>
    %338 = arith.addf %336, %337 : vector<2x128xf32>
    %339 = arith.select %5, %334, %338 : vector<2x128xi1>, vector<2x128xf32>
    %340 = vector.extract_strided_slice %339 {offsets = [0, 0], sizes = [2, 32], strides = [1, 1]} : vector<2x128xf32> to vector<2x32xf32>
    %341 = vector.extract_strided_slice %339 {offsets = [0, 32], sizes = [2, 32], strides = [1, 1]} : vector<2x128xf32> to vector<2x32xf32>
    %342 = vector.extract_strided_slice %339 {offsets = [0, 64], sizes = [2, 32], strides = [1, 1]} : vector<2x128xf32> to vector<2x32xf32>
    %343 = vector.extract_strided_slice %339 {offsets = [0, 96], sizes = [2, 32], strides = [1, 1]} : vector<2x128xf32> to vector<2x32xf32>
    %344 = arith.mulf %341, %325 : vector<2x32xf32>
    %345 = arith.mulf %340, %342 : vector<2x32xf32>
    %346 = arith.addf %344, %345 : vector<2x32xf32>
    %347 = math.tanh %346 : vector<2x32xf32>
    %348 = arith.mulf %343, %347 : vector<2x32xf32>
    %c14_123 = arith.constant 14 : index
    %c0_124 = arith.constant 0 : index
    %349 = vector.load %arg10[%c14_123, %c0_124] : memref<16x128xf32, #tpu.memory_space<vmem>>, vector<2x128xf32>
    %cst_125 = arith.constant dense<0.000000e+00> : vector<2x128xf32>
    %350 = tpu.matmul %348, %199, %cst_125 {dimension_numbers = #tpu.dot_dimension_numbers<[1], [0], [0], [1], [0, 0, 1, 1], [], []>} : vector<2x32xf32>, vector<32x128xf32>, vector<2x128xf32> -> vector<2x128xf32>
    %351 = arith.addf %349, %350 : vector<2x128xf32>
    %cst_126 = arith.constant 5.000000e-01 : f32
    %352 = vector.broadcast %cst_126 : f32 to vector<2x128xf32>
    %353 = arith.mulf %352, %351 : vector<2x128xf32>
    %354 = arith.select %5, %351, %353 : vector<2x128xi1>, vector<2x128xf32>
    %355 = math.tanh %354 : vector<2x128xf32>
    %cst_127 = arith.constant 5.000000e-01 : f32
    %356 = vector.broadcast %cst_127 : f32 to vector<2x128xf32>
    %357 = arith.mulf %356, %355 : vector<2x128xf32>
    %cst_128 = arith.constant 5.000000e-01 : f32
    %358 = vector.broadcast %cst_128 : f32 to vector<2x128xf32>
    %359 = arith.addf %357, %358 : vector<2x128xf32>
    %360 = arith.select %5, %355, %359 : vector<2x128xi1>, vector<2x128xf32>
    %361 = vector.extract_strided_slice %360 {offsets = [0, 0], sizes = [2, 32], strides = [1, 1]} : vector<2x128xf32> to vector<2x32xf32>
    %362 = vector.extract_strided_slice %360 {offsets = [0, 32], sizes = [2, 32], strides = [1, 1]} : vector<2x128xf32> to vector<2x32xf32>
    %363 = vector.extract_strided_slice %360 {offsets = [0, 64], sizes = [2, 32], strides = [1, 1]} : vector<2x128xf32> to vector<2x32xf32>
    %364 = vector.extract_strided_slice %360 {offsets = [0, 96], sizes = [2, 32], strides = [1, 1]} : vector<2x128xf32> to vector<2x32xf32>
    %365 = arith.mulf %362, %346 : vector<2x32xf32>
    %366 = arith.mulf %361, %363 : vector<2x32xf32>
    %367 = arith.addf %365, %366 : vector<2x32xf32>
    %368 = math.tanh %367 : vector<2x32xf32>
    %369 = arith.mulf %364, %368 : vector<2x32xf32>
    %c0_129 = arith.constant 0 : index
    %c0_130 = arith.constant 0 : index
    %370 = vector.load %arg7[%c0_129, %c0_130] : memref<32x10xf32, #tpu.memory_space<vmem>>, vector<32x10xf32>
    %cst_131 = arith.constant dense<0.000000e+00> : vector<2x10xf32>
    %371 = tpu.matmul %369, %370, %cst_131 {dimension_numbers = #tpu.dot_dimension_numbers<[1], [0], [0], [1], [0, 0, 1, 1], [], []>} : vector<2x32xf32>, vector<32x10xf32>, vector<2x10xf32> -> vector<2x10xf32>
    %c0_132 = arith.constant 0 : index
    %c0_133 = arith.constant 0 : index
    %372 = vector.load %arg8[%c0_132, %c0_133] : memref<1x10xf32, #tpu.memory_space<vmem>>, vector<1x10xf32>
    %373 = vector.broadcast %372 : vector<1x10xf32> to vector<2x10xf32>
    %374 = arith.addf %371, %373 : vector<2x10xf32>
    %c0_134 = arith.constant 0 : index
    %c0_135 = arith.constant 0 : index
    %375 = vector.load %arg9[%c0_134, %c0_135] : memref<2x10xf32, #tpu.memory_space<vmem>>, vector<2x10xf32>
    tpu.vector_store %arg9[%c0_134, %c0_135], %374 {strides = array<i32>} : memref<2x10xf32, #tpu.memory_space<vmem>>, vector<2x10xf32>,
    return
  }
}

</mosaic_0001>

<llo_original>
// kernel: robustlog_forward.1
$region0: #{robustlog_forward.1}
  #allocation0 [shape = 'u32[]', space=smem, size = 0x4, offset = 0x4, fixed_abs, tag = 'smem constant byte address 0x4 - core index']
  #allocation1 [shape = 'u32[72,128]{1,0:T(1,128)}', space=vmem, size = 0x9000, scoped, tag = 'internal scratch']
  #allocation2 [shape = 'f32[16,128]{1,0:T(8,128)}', space=vmem, size = 0x2000, scoped, tag = 'scratch operand']
  #allocation3 [shape = 'f32[16,32]{1,0:T(8,128)}', space=vmem, size = 0x2000, scoped, tag = 'scratch operand']
  %s0 = inlined_call_operand.vmem [shape: f32[16,16], index: 0, kind: input, shape index: {}]
  %s1 = inlined_call_operand.hbm [shape: f32[16,128], index: 1, kind: input, shape index: {}]
  %s2 = inlined_call_operand.vmem [shape: f32[32,128], index: 2, kind: input, shape index: {}]
  %s3 = inlined_call_operand.vmem [shape: f32[1,128], index: 3, kind: input, shape index: {}]
  %s4 = inlined_call_operand.vmem [shape: f32[32,128], index: 4, kind: input, shape index: {}]
  %s5 = inlined_call_operand.hbm [shape: f32[32,128], index: 5, kind: input, shape index: {}]
  %s6 = inlined_call_operand.vmem [shape: f32[1,128], index: 6, kind: input, shape index: {}]
  %s7 = inlined_call_operand.vmem [shape: f32[32,10], index: 7, kind: input, shape index: {}]
  %s8 = inlined_call_operand.vmem [shape: f32[1,10], index: 8, kind: input, shape index: {}]
  %s9 = inlined_call_operand.hbm [shape: f32[2,10], index: 9, kind: output, shape index: {}]
  %s10 = sld [smem:[#allocation0]]
  $region54: #{robustlog_forward.1} parent=0
    _
  %s12 = ssub.s32 1, %s10
  %s13 = scalar_select 0, %s12, %s10
  $region1: #{robustlog_forward.1} parent=0
    #allocation4 [shape = 'u8[8192]{0}', space=vmem, size = 0x2000, scoped, tag = 'input window, operand 1, single buffered']
    #allocation5 [shape = 's32[1]{0}', space=sflag, size = 0x4, scoped, tag = 'scoped memory for robustlog_forward.1']
    #allocation6 [shape = 's32[1]{0}', space=sflag, size = 0x4, scoped, tag = 'scoped memory for robustlog_forward.1']
    #allocation7 [shape = 'u8[16384]{0}', space=vmem, size = 0x4000, scoped, tag = 'input window, operand 5, single buffered']
    #allocation8 [shape = 's32[1]{0}', space=sflag, size = 0x4, scoped, tag = 'scoped memory for robustlog_forward.1']
    #allocation9 [shape = 'u8[1024]{0}', space=vmem, size = 0x400, scoped, tag = 'output window, operand 0, single buffered']
    %14 = vsyncpa [#allocation5], 0
    %15 = vsyncpa [#allocation8], 0
    %16 = vsyncpa [#allocation6], 0
    // Predicated region
    $region2: #{robustlog_forward.1} parent=1 // pred_check
      _
    $region3: #{robustlog_forward.1} parent=1 // pred_check_branch
      %18 = sbr.rel (0) target = $region5
    $region4: #{robustlog_forward.1} parent=1 // pred_region
      _
    $region5: #{robustlog_forward.1} parent=1 // pred_fallthru
      _
    // Predicated region
    $region6: #{robustlog_forward.1} parent=1 // pred_check
      _
    $region7: #{robustlog_forward.1} parent=1 // pred_check_branch
      %20 = sbr.rel (0) target = $region9
    $region8: #{robustlog_forward.1} parent=1 // pred_region
      %22 = vsyncadd [#allocation5], 0
      %s23 = sshll.u32 %s1, 4
      %s24 = int_to_ptr.hbm [resolvable:$true] %s23
      %s25 = sshll.u32 [#allocation4], 4
      %s26 = int_to_ptr.vmem [resolvable:$true] %s25
      %31 = dma.hbm_to_vmem [thread:$0]  %s24, 256, %s26, [#allocation5], 128, 128, 8
    $region9: #{robustlog_forward.1} parent=1 // pred_fallthru
      _
    // Predicated region
    $region10: #{robustlog_forward.1} parent=1 // pred_check
      _
    $region11: #{robustlog_forward.1} parent=1 // pred_check_branch
      %33 = sbr.rel (0) target = $region13
    $region12: #{robustlog_forward.1} parent=1 // pred_region
      _
    $region13: #{robustlog_forward.1} parent=1 // pred_fallthru
      _
    // Predicated region
    $region14: #{robustlog_forward.1} parent=1 // pred_check
      _
    $region15: #{robustlog_forward.1} parent=1 // pred_check_branch
      %35 = sbr.rel (0) target = $region17
    $region16: #{robustlog_forward.1} parent=1 // pred_region
      _
    $region17: #{robustlog_forward.1} parent=1 // pred_fallthru
      _
    // Predicated region
    $region18: #{robustlog_forward.1} parent=1 // pred_check
      _
    $region19: #{robustlog_forward.1} parent=1 // pred_check_branch
      %37 = sbr.rel (0) target = $region21
    $region20: #{robustlog_forward.1} parent=1 // pred_region
      _
    $region21: #{robustlog_forward.1} parent=1 // pred_fallthru
      _
    // Predicated region
    $region22: #{robustlog_forward.1} parent=1 // pred_check
      _
    $region23: #{robustlog_forward.1} parent=1 // pred_check_branch
      %39 = sbr.rel (0) target = $region25
    $region24: #{robustlog_forward.1} parent=1 // pred_region
      %41 = vsyncadd [#allocation8], 0
      %s42 = sshll.u32 %s5, 4
      %s43 = int_to_ptr.hbm [resolvable:$true] %s42
      %s44 = sshll.u32 [#allocation7], 4
      %s45 = int_to_ptr.vmem [resolvable:$true] %s44
      %50 = dma.hbm_to_vmem [thread:$0]  %s43, 512, %s45, [#allocation8], 128, 128, 8
    $region25: #{robustlog_forward.1} parent=1 // pred_fallthru
      _
    // Predicated region
    $region26: #{robustlog_forward.1} parent=1 // pred_check
      _
    $region27: #{robustlog_forward.1} parent=1 // pred_check_branch
      %52 = sbr.rel (0) target = $region29
    $region28: #{robustlog_forward.1} parent=1 // pred_region
      _
    $region29: #{robustlog_forward.1} parent=1 // pred_fallthru
      _
    // Predicated region
    $region30: #{robustlog_forward.1} parent=1 // pred_check
      _
    $region31: #{robustlog_forward.1} parent=1 // pred_check_branch
      %54 = sbr.rel (0) target = $region33
    $region32: #{robustlog_forward.1} parent=1 // pred_region
      _
    $region33: #{robustlog_forward.1} parent=1 // pred_fallthru
      _
    // Predicated region
    $region34: #{robustlog_forward.1} parent=1 // pred_check
      _
    $region35: #{robustlog_forward.1} parent=1 // pred_check_branch
      %56 = sbr.rel (0) target = $region37
    $region36: #{robustlog_forward.1} parent=1 // pred_region
      _
    $region37: #{robustlog_forward.1} parent=1 // pred_fallthru
      _
    // Predicated region
    $region38: #{robustlog_forward.1} parent=1 // pred_check
      _
    $region39: #{robustlog_forward.1} parent=1 // pred_check_branch
      %58 = sbr.rel (0) target = $region41
    $region40: #{robustlog_forward.1} parent=1 // pred_region
      %60 = dma.done [#allocation5], 256
    $region41: #{robustlog_forward.1} parent=1 // pred_fallthru
      _
    // Predicated region
    $region42: #{robustlog_forward.1} parent=1 // pred_check
      _
    $region43: #{robustlog_forward.1} parent=1 // pred_check_branch
      %62 = sbr.rel (0) target = $region45
    $region44: #{robustlog_forward.1} parent=1 // pred_region
      %64 = dma.done [#allocation8], 512
    $region45: #{robustlog_forward.1} parent=1 // pred_fallthru
      _
    %v65 = vlaneseq
    %v66 = vand.u32 %v65, 127
    %vm67 = vcmp.ge.s32.totalorder %v66, 64
    %vm68 = vcmp.lt.s32.totalorder %v66, 96
    %vm69 = vmand %vm67, %vm68
    %v70 = vld [vmem:[%s0] sm:$0xff]
    %v71 = vld [vmem:[%s0 + $0x8] sm:$0xff]
    %v72 = vld [vmem:[#allocation4] sm:$0xff]
    %v73 = vld [vmem:[#allocation4 + $0x8] sm:$0xff]
    %v74 = vld [vmem:[%s3] sm:$0x1]
    %v76 = vperm.slane %v74, 0
    %vm78 = vcmask 130048
    %v80 = vsel %vm78, %v70, 0
    %v83 = vsel %vm78, %v71, 0
    %85 = vmatpush.msra.mxu0 0.0
    %86 = vmatpush.msra.mxu0 0.0
    %87 = vmatpush.msra.mxu0 0.0
    %88 = vmatpush.msra.mxu0 0.0
    %89 = vmatpush.msra.mxu0 0.0
    %90 = vmatpush.msra.mxu0 0.0
    %91 = vmatpush.msra.mxu0 0.0
    %92 = vmatpush.msra.mxu0 0.0
    %93 = vmatpush.msra.mxu0 0.0
    %94 = vmatpush.msra.mxu0 0.0
    %95 = vmatpush.msra.mxu0 0.0
    %96 = vmatpush.msra.mxu0 0.0
    %97 = vmatpush.msra.mxu0 0.0
    %98 = vmatpush.msra.mxu0 0.0
    %99 = vmatpush.msra.mxu0 %v73
    %100 = vmatpush.msra.mxu0 %v72
    %101 = vmatmul.f32.gmra.mxu0 %v80
    %v102 = vpop.f32.mrf.mxu0
    %v103 = vadd.f32 %v76, %v102
    %104 = vmatmul.f32.gmra.mxu0 %v83
    %v105 = vpop.f32.mrf.mxu0
    %v106 = vadd.f32 %v76, %v105
    %107 = vdwg.mxu0
    %108 = vst [vmem:[#allocation2] sm:$0xff] %v103
    %109 = vst [vmem:[#allocation2 + $0x8] sm:$0xff] %v106
    %v110 = vld [vmem:[%s2] sm:$0xff]
    %v111 = vld [vmem:[%s2 + $0x8] sm:$0xff]
    %v112 = vld [vmem:[%s2 + $0x10] sm:$0xff]
    %v113 = vld [vmem:[%s2 + $0x18] sm:$0xff]
    %v114 = vld [vmem:[#allocation2] sm:$0x3]
    %vm115 = vcmask 261120
    %v117 = vsel %vm115, 0.0, 0
    %119 = vmatpush.msra.mxu0 0.0
    %120 = vmatpush.msra.mxu0 0.0
    %121 = vmatpush.msra.mxu0 0.0
    %122 = vmatpush.msra.mxu0 0.0
    %123 = vmatpush.msra.mxu0 0.0
    %124 = vmatpush.msra.mxu0 0.0
    %125 = vmatpush.msra.mxu0 0.0
    %126 = vmatpush.msra.mxu0 0.0
    %127 = vmatpush.msra.mxu0 0.0
    %128 = vmatpush.msra.mxu0 0.0
    %129 = vmatpush.msra.mxu0 0.0
    %130 = vmatpush.msra.mxu0 0.0
    %131 = vmatpush.msra.mxu0 %v113
    %132 = vmatpush.msra.mxu0 %v112
    %133 = vmatpush.msra.mxu0 %v111
    %134 = vmatpush.msra.mxu0 %v110
    %135 = vmatmul.f32.gmra.mxu0 %v117
    %v136 = vpop.f32.mrf.mxu0
    %v137 = vadd.f32 0.0, %v136
    %138 = vdwg.mxu0
    %v139 = vadd.f32 %v114, %v137
    %v140 = vmul.f32 %v139, 0.5
    %v141 = vsel %vm69, %v139, %v140
    %v142 = vtanh.pop %v141
    %v143 = vmul.f32 %v142, 0.5
    %v144 = vadd.f32 %v143, 0.5
    %v145 = vsel %vm69, %v142, %v144
    %v146 = vmul.f32 %v145, 0.0
    %148 = vrot.lane.b32.xlu0 %v145, 64
    %v149 = vpop.permute.xlu0 %148
    %v151 = vmul.f32 %v145, %v149
    %153 = vrot.lane.b32.xlu0 %v151, 32
    %v154 = vpop.permute.xlu0 %153
    %v156 = vadd.f32 %v146, %v154
    %v157 = vtanh.pop %v156
    %159 = vrot.lane.b32.xlu0 %v157, 64
    %v160 = vpop.permute.xlu0 %159
    %v162 = vmul.f32 %v145, %v160
    %164 = vrot.lane.b32.xlu0 %v162, 32
    %v165 = vpop.permute.xlu0 %164
    %vm167 = vcmask 254976
    %168 = vst.msk [vmem:[#allocation3] sm:$0x3] %vm167, %v165
    %v169 = vld [vmem:[#allocation2 + $0x2] sm:$0x3]
    %v170 = vsel %vm115, %v165, 0
    %172 = vmatpush.msra.mxu0 0.0
    %173 = vmatpush.msra.mxu0 0.0
    %174 = vmatpush.msra.mxu0 0.0
    %175 = vmatpush.msra.mxu0 0.0
    %176 = vmatpush.msra.mxu0 0.0
    %177 = vmatpush.msra.mxu0 0.0
    %178 = vmatpush.msra.mxu0 0.0
    %179 = vmatpush.msra.mxu0 0.0
    %180 = vmatpush.msra.mxu0 0.0
    %181 = vmatpush.msra.mxu0 0.0
    %182 = vmatpush.msra.mxu0 0.0
    %183 = vmatpush.msra.mxu0 0.0
    %184 = vmatpush.msra.mxu0 %v113
    %185 = vmatpush.msra.mxu0 %v112
    %186 = vmatpush.msra.mxu0 %v111
    %187 = vmatpush.msra.mxu0 %v110
    %188 = vmatmul.f32.gmra.mxu0 %v170
    %v189 = vpop.f32.mrf.mxu0
    %v190 = vadd.f32 0.0, %v189
    %191 = vdwg.mxu0
    %v192 = vadd.f32 %v169, %v190
    %v193 = vmul.f32 %v192, 0.5
    %v194 = vsel %vm69, %v192, %v193
    %v195 = vtanh.pop %v194
    %v196 = vmul.f32 %v195, 0.5
    %v197 = vadd.f32 %v196, 0.5
    %v198 = vsel %vm69, %v195, %v197
    %v199 = vmul.f32 %v198, %v156
    %201 = vrot.lane.b32.xlu0 %v198, 64
    %v202 = vpop.permute.xlu0 %201
    %v204 = vmul.f32 %v198, %v202
    %206 = vrot.lane.b32.xlu0 %v204, 32
    %v207 = vpop.permute.xlu0 %206
    %v209 = vadd.f32 %v199, %v207
    %v210 = vtanh.pop %v209
    %212 = vrot.lane.b32.xlu0 %v210, 64
    %v213 = vpop.permute.xlu0 %212
    %v215 = vmul.f32 %v198, %v213
    %217 = vrot.lane.b32.xlu0 %v215, 32
    %v218 = vpop.permute.xlu0 %217
    %220 = vst.msk [vmem:[#allocation3 + $0x2] sm:$0x3] %vm167, %v218
    %v221 = vld [vmem:[#allocation2 + $0x4] sm:$0x3]
    %v222 = vsel %vm115, %v218, 0
    %224 = vmatpush.msra.mxu0 0.0
    %225 = vmatpush.msra.mxu0 0.0
    %226 = vmatpush.msra.mxu0 0.0
    %227 = vmatpush.msra.mxu0 0.0
    %228 = vmatpush.msra.mxu0 0.0
    %229 = vmatpush.msra.mxu0 0.0
    %230 = vmatpush.msra.mxu0 0.0
    %231 = vmatpush.msra.mxu0 0.0
    %232 = vmatpush.msra.mxu0 0.0
    %233 = vmatpush.msra.mxu0 0.0
    %234 = vmatpush.msra.mxu0 0.0
    %235 = vmatpush.msra.mxu0 0.0
    %236 = vmatpush.msra.mxu0 %v113
    %237 = vmatpush.msra.mxu0 %v112
    %238 = vmatpush.msra.mxu0 %v111
    %239 = vmatpush.msra.mxu0 %v110
    %240 = vmatmul.f32.gmra.mxu0 %v222
    %v241 = vpop.f32.mrf.mxu0
    %v242 = vadd.f32 0.0, %v241
    %243 = vdwg.mxu0
    %v244 = vadd.f32 %v221, %v242
    %v245 = vmul.f32 %v244, 0.5
    %v246 = vsel %vm69, %v244, %v245
    %v247 = vtanh.pop %v246
    %v248 = vmul.f32 %v247, 0.5
    %v249 = vadd.f32 %v248, 0.5
    %v250 = vsel %vm69, %v247, %v249
    %v251 = vmul.f32 %v250, %v209
    %253 = vrot.lane.b32.xlu0 %v250, 64
    %v254 = vpop.permute.xlu0 %253
    %v256 = vmul.f32 %v250, %v254
    %258 = vrot.lane.b32.xlu0 %v256, 32
    %v259 = vpop.permute.xlu0 %258
    %v261 = vadd.f32 %v251, %v259
    %v262 = vtanh.pop %v261
    %264 = vrot.lane.b32.xlu0 %v262, 64
    %v265 = vpop.permute.xlu0 %264
    %v267 = vmul.f32 %v250, %v265
    %269 = vrot.lane.b32.xlu0 %v267, 32
    %v270 = vpop.permute.xlu0 %269
    %272 = vst.msk [vmem:[#allocation3 + $0x4] sm:$0x3] %vm167, %v270
    %v273 = vld [vmem:[#allocation2 + $0x6] sm:$0x3]
    %v274 = vsel %vm115, %v270, 0
    %276 = vmatpush.msra.mxu0 0.0
    %277 = vmatpush.msra.mxu0 0.0
    %278 = vmatpush.msra.mxu0 0.0
    %279 = vmatpush.msra.mxu0 0.0
    %280 = vmatpush.msra.mxu0 0.0
    %281 = vmatpush.msra.mxu0 0.0
    %282 = vmatpush.msra.mxu0 0.0
    %283 = vmatpush.msra.mxu0 0.0
    %284 = vmatpush.msra.mxu0 0.0
    %285 = vmatpush.msra.mxu0 0.0
    %286 = vmatpush.msra.mxu0 0.0
    %287 = vmatpush.msra.mxu0 0.0
    %288 = vmatpush.msra.mxu0 %v113
    %289 = vmatpush.msra.mxu0 %v112
    %290 = vmatpush.msra.mxu0 %v111
    %291 = vmatpush.msra.mxu0 %v110
    %292 = vmatmul.f32.gmra.mxu0 %v274
    %v293 = vpop.f32.mrf.mxu0
    %v294 = vadd.f32 0.0, %v293
    %295 = vdwg.mxu0
    %v296 = vadd.f32 %v273, %v294
    %v297 = vmul.f32 %v296, 0.5
    %v298 = vsel %vm69, %v296, %v297
    %v299 = vtanh.pop %v298
    %v300 = vmul.f32 %v299, 0.5
    %v301 = vadd.f32 %v300, 0.5
    %v302 = vsel %vm69, %v299, %v301
    %v303 = vmul.f32 %v302, %v261
    %305 = vrot.lane.b32.xlu0 %v302, 64
    %v306 = vpop.permute.xlu0 %305
    %v308 = vmul.f32 %v302, %v306
    %310 = vrot.lane.b32.xlu0 %v308, 32
    %v311 = vpop.permute.xlu0 %310
    %v313 = vadd.f32 %v303, %v311
    %v314 = vtanh.pop %v313
    %316 = vrot.lane.b32.xlu0 %v314, 64
    %v317 = vpop.permute.xlu0 %316
    %v319 = vmul.f32 %v302, %v317
    %321 = vrot.lane.b32.xlu0 %v319, 32
    %v322 = vpop.permute.xlu0 %321
    %324 = vst.msk [vmem:[#allocation3 + $0x6] sm:$0x3] %vm167, %v322
    %v325 = vld [vmem:[#allocation2 + $0x8] sm:$0x3]
    %v326 = vsel %vm115, %v322, 0
    %328 = vmatpush.msra.mxu0 0.0
    %329 = vmatpush.msra.mxu0 0.0
    %330 = vmatpush.msra.mxu0 0.0
    %331 = vmatpush.msra.mxu0 0.0
    %332 = vmatpush.msra.mxu0 0.0
    %333 = vmatpush.msra.mxu0 0.0
    %334 = vmatpush.msra.mxu0 0.0
    %335 = vmatpush.msra.mxu0 0.0
    %336 = vmatpush.msra.mxu0 0.0
    %337 = vmatpush.msra.mxu0 0.0
    %338 = vmatpush.msra.mxu0 0.0
    %339 = vmatpush.msra.mxu0 0.0
    %340 = vmatpush.msra.mxu0 %v113
    %341 = vmatpush.msra.mxu0 %v112
    %342 = vmatpush.msra.mxu0 %v111
    %343 = vmatpush.msra.mxu0 %v110
    %344 = vmatmul.f32.gmra.mxu0 %v326
    %v345 = vpop.f32.mrf.mxu0
    %v346 = vadd.f32 0.0, %v345
    %347 = vdwg.mxu0
    %v348 = vadd.f32 %v325, %v346
    %v349 = vmul.f32 %v348, 0.5
    %v350 = vsel %vm69, %v348, %v349
    %v351 = vtanh.pop %v350
    %v352 = vmul.f32 %v351, 0.5
    %v353 = vadd.f32 %v352, 0.5
    %v354 = vsel %vm69, %v351, %v353
    %v355 = vmul.f32 %v354, %v313
    %357 = vrot.lane.b32.xlu0 %v354, 64
    %v358 = vpop.permute.xlu0 %357
    %v360 = vmul.f32 %v354, %v358
    %362 = vrot.lane.b32.xlu0 %v360, 32
    %v363 = vpop.permute.xlu0 %362
    %v365 = vadd.f32 %v355, %v363
    %v366 = vtanh.pop %v365
    %368 = vrot.lane.b32.xlu0 %v366, 64
    %v369 = vpop.permute.xlu0 %368
    %v371 = vmul.f32 %v354, %v369
    %373 = vrot.lane.b32.xlu0 %v371, 32
    %v374 = vpop.permute.xlu0 %373
    %376 = vst.msk [vmem:[#allocation3 + $0x8] sm:$0x3] %vm167, %v374
    %v377 = vld [vmem:[#allocation2 + $0xa] sm:$0x3]
    %v378 = vsel %vm115, %v374, 0
    %380 = vmatpush.msra.mxu0 0.0
    %381 = vmatpush.msra.mxu0 0.0
    %382 = vmatpush.msra.mxu0 0.0
    %383 = vmatpush.msra.mxu0 0.0
    %384 = vmatpush.msra.mxu0 0.0
    %385 = vmatpush.msra.mxu0 0.0
    %386 = vmatpush.msra.mxu0 0.0
    %387 = vmatpush.msra.mxu0 0.0
    %388 = vmatpush.msra.mxu0 0.0
    %389 = vmatpush.msra.mxu0 0.0
    %390 = vmatpush.msra.mxu0 0.0
    %391 = vmatpush.msra.mxu0 0.0
    %392 = vmatpush.msra.mxu0 %v113
    %393 = vmatpush.msra.mxu0 %v112
    %394 = vmatpush.msra.mxu0 %v111
    %395 = vmatpush.msra.mxu0 %v110
    %396 = vmatmul.f32.gmra.mxu0 %v378
    %v397 = vpop.f32.mrf.mxu0
    %v398 = vadd.f32 0.0, %v397
    %399 = vdwg.mxu0
    %v400 = vadd.f32 %v377, %v398
    %v401 = vmul.f32 %v400, 0.5
    %v402 = vsel %vm69, %v400, %v401
    %v403 = vtanh.pop %v402
    %v404 = vmul.f32 %v403, 0.5
    %v405 = vadd.f32 %v404, 0.5
    %v406 = vsel %vm69, %v403, %v405
    %v407 = vmul.f32 %v406, %v365
    %409 = vrot.lane.b32.xlu0 %v406, 64
    %v410 = vpop.permute.xlu0 %409
    %v412 = vmul.f32 %v406, %v410
    %414 = vrot.lane.b32.xlu0 %v412, 32
    %v415 = vpop.permute.xlu0 %414
    %v417 = vadd.f32 %v407, %v415
    %v418 = vtanh.pop %v417
    %420 = vrot.lane.b32.xlu0 %v418, 64
    %v421 = vpop.permute.xlu0 %420
    %v423 = vmul.f32 %v406, %v421
    %425 = vrot.lane.b32.xlu0 %v423, 32
    %v426 = vpop.permute.xlu0 %425
    %428 = vst.msk [vmem:[#allocation3 + $0xa] sm:$0x3] %vm167, %v426
    %v429 = vld [vmem:[#allocation2 + $0xc] sm:$0x3]
    %v430 = vsel %vm115, %v426, 0
    %432 = vmatpush.msra.mxu0 0.0
    %433 = vmatpush.msra.mxu0 0.0
    %434 = vmatpush.msra.mxu0 0.0
    %435 = vmatpush.msra.mxu0 0.0
    %436 = vmatpush.msra.mxu0 0.0
    %437 = vmatpush.msra.mxu0 0.0
    %438 = vmatpush.msra.mxu0 0.0
    %439 = vmatpush.msra.mxu0 0.0
    %440 = vmatpush.msra.mxu0 0.0
    %441 = vmatpush.msra.mxu0 0.0
    %442 = vmatpush.msra.mxu0 0.0
    %443 = vmatpush.msra.mxu0 0.0
    %444 = vmatpush.msra.mxu0 %v113
    %445 = vmatpush.msra.mxu0 %v112
    %446 = vmatpush.msra.mxu0 %v111
    %447 = vmatpush.msra.mxu0 %v110
    %448 = vmatmul.f32.gmra.mxu0 %v430
    %v449 = vpop.f32.mrf.mxu0
    %v450 = vadd.f32 0.0, %v449
    %451 = vdwg.mxu0
    %v452 = vadd.f32 %v429, %v450
    %v453 = vmul.f32 %v452, 0.5
    %v454 = vsel %vm69, %v452, %v453
    %v455 = vtanh.pop %v454
    %v456 = vmul.f32 %v455, 0.5
    %v457 = vadd.f32 %v456, 0.5
    %v458 = vsel %vm69, %v455, %v457
    %v459 = vmul.f32 %v458, %v417
    %461 = vrot.lane.b32.xlu0 %v458, 64
    %v462 = vpop.permute.xlu0 %461
    %v464 = vmul.f32 %v458, %v462
    %466 = vrot.lane.b32.xlu0 %v464, 32
    %v467 = vpop.permute.xlu0 %466
    %v469 = vadd.f32 %v459, %v467
    %v470 = vtanh.pop %v469
    %472 = vrot.lane.b32.xlu0 %v470, 64
    %v473 = vpop.permute.xlu0 %472
    %v475 = vmul.f32 %v458, %v473
    %477 = vrot.lane.b32.xlu0 %v475, 32
    %v478 = vpop.permute.xlu0 %477
    %480 = vst.msk [vmem:[#allocation3 + $0xc] sm:$0x3] %vm167, %v478
    %v481 = vld [vmem:[#allocation2 + $0xe] sm:$0x3]
    %v482 = vsel %vm115, %v478, 0
    %484 = vmatpush.msra.mxu0 0.0
    %485 = vmatpush.msra.mxu0 0.0
    %486 = vmatpush.msra.mxu0 0.0
    %487 = vmatpush.msra.mxu0 0.0
    %488 = vmatpush.msra.mxu0 0.0
    %489 = vmatpush.msra.mxu0 0.0
    %490 = vmatpush.msra.mxu0 0.0
    %491 = vmatpush.msra.mxu0 0.0
    %492 = vmatpush.msra.mxu0 0.0
    %493 = vmatpush.msra.mxu0 0.0
    %494 = vmatpush.msra.mxu0 0.0
    %495 = vmatpush.msra.mxu0 0.0
    %496 = vmatpush.msra.mxu0 %v113
    %497 = vmatpush.msra.mxu0 %v112
    %498 = vmatpush.msra.mxu0 %v111
    %499 = vmatpush.msra.mxu0 %v110
    %500 = vmatmul.f32.gmra.mxu0 %v482
    %v501 = vpop.f32.mrf.mxu0
    %v502 = vadd.f32 0.0, %v501
    %503 = vdwg.mxu0
    %v504 = vadd.f32 %v481, %v502
    %v505 = vmul.f32 %v504, 0.5
    %v506 = vsel %vm69, %v504, %v505
    %v507 = vtanh.pop %v506
    %v508 = vmul.f32 %v507, 0.5
    %v509 = vadd.f32 %v508, 0.5
    %v510 = vsel %vm69, %v507, %v509
    %v511 = vmul.f32 %v510, %v469
    %513 = vrot.lane.b32.xlu0 %v510, 64
    %v514 = vpop.permute.xlu0 %513
    %v516 = vmul.f32 %v510, %v514
    %518 = vrot.lane.b32.xlu0 %v516, 32
    %v519 = vpop.permute.xlu0 %518
    %v521 = vadd.f32 %v511, %v519
    %v522 = vtanh.pop %v521
    %524 = vrot.lane.b32.xlu0 %v522, 64
    %v525 = vpop.permute.xlu0 %524
    %v527 = vmul.f32 %v510, %v525
    %529 = vrot.lane.b32.xlu0 %v527, 32
    %v530 = vpop.permute.xlu0 %529
    %532 = vst.msk [vmem:[#allocation3 + $0xe] sm:$0x3] %vm167, %v530
    %v533 = vld [vmem:[#allocation3] sm:$0xff]
    %v534 = vld [vmem:[#allocation3 + $0x8] sm:$0xff]
    %v535 = vld [vmem:[%s4] sm:$0xff]
    %v536 = vld [vmem:[%s4 + $0x8] sm:$0xff]
    %v537 = vld [vmem:[%s4 + $0x10] sm:$0xff]
    %v538 = vld [vmem:[%s4 + $0x18] sm:$0xff]
    %v539 = vld [vmem:[%s6] sm:$0x1]
    %v541 = vperm.slane %v539, 0
    %v544 = vsel %vm115, %v533, 0
    %v547 = vsel %vm115, %v534, 0
    %549 = vmatpush.msra.mxu0 0.0
    %550 = vmatpush.msra.mxu0 0.0
    %551 = vmatpush.msra.mxu0 0.0
    %552 = vmatpush.msra.mxu0 0.0
    %553 = vmatpush.msra.mxu0 0.0
    %554 = vmatpush.msra.mxu0 0.0
    %555 = vmatpush.msra.mxu0 0.0
    %556 = vmatpush.msra.mxu0 0.0
    %557 = vmatpush.msra.mxu0 0.0
    %558 = vmatpush.msra.mxu0 0.0
    %559 = vmatpush.msra.mxu0 0.0
    %560 = vmatpush.msra.mxu0 0.0
    %561 = vmatpush.msra.mxu0 %v538
    %562 = vmatpush.msra.mxu0 %v537
    %563 = vmatpush.msra.mxu0 %v536
    %564 = vmatpush.msra.mxu0 %v535
    %565 = vmatmul.f32.gmra.mxu0 %v544
    %v566 = vpop.f32.mrf.mxu0
    %v567 = vadd.f32 %v541, %v566
    %568 = vmatmul.f32.gmra.mxu0 %v547
    %v569 = vpop.f32.mrf.mxu0
    %v570 = vadd.f32 %v541, %v569
    %571 = vdwg.mxu0
    %572 = vst [vmem:[#allocation2] sm:$0xff] %v567
    %573 = vst [vmem:[#allocation2 + $0x8] sm:$0xff] %v570
    %v574 = vld [vmem:[#allocation7] sm:$0xff]
    %v575 = vld [vmem:[#allocation7 + $0x8] sm:$0xff]
    %v576 = vld [vmem:[#allocation7 + $0x10] sm:$0xff]
    %v577 = vld [vmem:[#allocation7 + $0x18] sm:$0xff]
    %v578 = vld [vmem:[#allocation2] sm:$0x3]
    %579 = vmatpush.msra.mxu0 0.0
    %580 = vmatpush.msra.mxu0 0.0
    %581 = vmatpush.msra.mxu0 0.0
    %582 = vmatpush.msra.mxu0 0.0
    %583 = vmatpush.msra.mxu0 0.0
    %584 = vmatpush.msra.mxu0 0.0
    %585 = vmatpush.msra.mxu0 0.0
    %586 = vmatpush.msra.mxu0 0.0
    %587 = vmatpush.msra.mxu0 0.0
    %588 = vmatpush.msra.mxu0 0.0
    %589 = vmatpush.msra.mxu0 0.0
    %590 = vmatpush.msra.mxu0 0.0
    %591 = vmatpush.msra.mxu0 %v577
    %592 = vmatpush.msra.mxu0 %v576
    %593 = vmatpush.msra.mxu0 %v575
    %594 = vmatpush.msra.mxu0 %v574
    %595 = vmatmul.f32.gmra.mxu0 %v117
    %v596 = vpop.f32.mrf.mxu0
    %v597 = vadd.f32 0.0, %v596
    %598 = vdwg.mxu0
    %v599 = vadd.f32 %v578, %v597
    %v600 = vmul.f32 %v599, 0.5
    %v601 = vsel %vm69, %v599, %v600
    %v602 = vtanh.pop %v601
    %v603 = vmul.f32 %v602, 0.5
    %v604 = vadd.f32 %v603, 0.5
    %v605 = vsel %vm69, %v602, %v604
    %v606 = vmul.f32 %v605, 0.0
    %608 = vrot.lane.b32.xlu0 %v605, 64
    %v609 = vpop.permute.xlu0 %608
    %v611 = vmul.f32 %v605, %v609
    %613 = vrot.lane.b32.xlu0 %v611, 32
    %v614 = vpop.permute.xlu0 %613
    %v616 = vadd.f32 %v606, %v614
    %v617 = vtanh.pop %v616
    %619 = vrot.lane.b32.xlu0 %v617, 64
    %v620 = vpop.permute.xlu0 %619
    %v622 = vmul.f32 %v605, %v620
    %v623 = vld [vmem:[#allocation2 + $0x2] sm:$0x3]
    %625 = vrot.lane.b32.xlu0 %v622, 32
    %v626 = vpop.permute.xlu0 %625
    %v627 = vsel %vm115, %v626, 0
    %629 = vmatpush.msra.mxu0 0.0
    %630 = vmatpush.msra.mxu0 0.0
    %631 = vmatpush.msra.mxu0 0.0
    %632 = vmatpush.msra.mxu0 0.0
    %633 = vmatpush.msra.mxu0 0.0
    %634 = vmatpush.msra.mxu0 0.0
    %635 = vmatpush.msra.mxu0 0.0
    %636 = vmatpush.msra.mxu0 0.0
    %637 = vmatpush.msra.mxu0 0.0
    %638 = vmatpush.msra.mxu0 0.0
    %639 = vmatpush.msra.mxu0 0.0
    %640 = vmatpush.msra.mxu0 0.0
    %641 = vmatpush.msra.mxu0 %v577
    %642 = vmatpush.msra.mxu0 %v576
    %643 = vmatpush.msra.mxu0 %v575
    %644 = vmatpush.msra.mxu0 %v574
    %645 = vmatmul.f32.gmra.mxu0 %v627
    %v646 = vpop.f32.mrf.mxu0
    %v647 = vadd.f32 0.0, %v646
    %648 = vdwg.mxu0
    %v649 = vadd.f32 %v623, %v647
    %v650 = vmul.f32 %v649, 0.5
    %v651 = vsel %vm69, %v649, %v650
    %v652 = vtanh.pop %v651
    %v653 = vmul.f32 %v652, 0.5
    %v654 = vadd.f32 %v653, 0.5
    %v655 = vsel %vm69, %v652, %v654
    %v656 = vmul.f32 %v655, %v616
    %658 = vrot.lane.b32.xlu0 %v655, 64
    %v659 = vpop.permute.xlu0 %658
    %v661 = vmul.f32 %v655, %v659
    %663 = vrot.lane.b32.xlu0 %v661, 32
    %v664 = vpop.permute.xlu0 %663
    %v666 = vadd.f32 %v656, %v664
    %v667 = vtanh.pop %v666
    %669 = vrot.lane.b32.xlu0 %v667, 64
    %v670 = vpop.permute.xlu0 %669
    %v672 = vmul.f32 %v655, %v670
    %v673 = vld [vmem:[#allocation2 + $0x4] sm:$0x3]
    %675 = vrot.lane.b32.xlu0 %v672, 32
    %v676 = vpop.permute.xlu0 %675
    %v677 = vsel %vm115, %v676, 0
    %679 = vmatpush.msra.mxu0 0.0
    %680 = vmatpush.msra.mxu0 0.0
    %681 = vmatpush.msra.mxu0 0.0
    %682 = vmatpush.msra.mxu0 0.0
    %683 = vmatpush.msra.mxu0 0.0
    %684 = vmatpush.msra.mxu0 0.0
    %685 = vmatpush.msra.mxu0 0.0
    %686 = vmatpush.msra.mxu0 0.0
    %687 = vmatpush.msra.mxu0 0.0
    %688 = vmatpush.msra.mxu0 0.0
    %689 = vmatpush.msra.mxu0 0.0
    %690 = vmatpush.msra.mxu0 0.0
    %691 = vmatpush.msra.mxu0 %v577
    %692 = vmatpush.msra.mxu0 %v576
    %693 = vmatpush.msra.mxu0 %v575
    %694 = vmatpush.msra.mxu0 %v574
    %695 = vmatmul.f32.gmra.mxu0 %v677
    %v696 = vpop.f32.mrf.mxu0
    %v697 = vadd.f32 0.0, %v696
    %698 = vdwg.mxu0
    %v699 = vadd.f32 %v673, %v697
    %v700 = vmul.f32 %v699, 0.5
    %v701 = vsel %vm69, %v699, %v700
    %v702 = vtanh.pop %v701
    %v703 = vmul.f32 %v702, 0.5
    %v704 = vadd.f32 %v703, 0.5
    %v705 = vsel %vm69, %v702, %v704
    %v706 = vmul.f32 %v705, %v666
    %708 = vrot.lane.b32.xlu0 %v705, 64
    %v709 = vpop.permute.xlu0 %708
    %v711 = vmul.f32 %v705, %v709
    %713 = vrot.lane.b32.xlu0 %v711, 32
    %v714 = vpop.permute.xlu0 %713
    %v716 = vadd.f32 %v706, %v714
    %v717 = vtanh.pop %v716
    %719 = vrot.lane.b32.xlu0 %v717, 64
    %v720 = vpop.permute.xlu0 %719
    %v722 = vmul.f32 %v705, %v720
    %v723 = vld [vmem:[#allocation2 + $0x6] sm:$0x3]
    %725 = vrot.lane.b32.xlu0 %v722, 32
    %v726 = vpop.permute.xlu0 %725
    %v727 = vsel %vm115, %v726, 0
    %729 = vmatpush.msra.mxu0 0.0
    %730 = vmatpush.msra.mxu0 0.0
    %731 = vmatpush.msra.mxu0 0.0
    %732 = vmatpush.msra.mxu0 0.0
    %733 = vmatpush.msra.mxu0 0.0
    %734 = vmatpush.msra.mxu0 0.0
    %735 = vmatpush.msra.mxu0 0.0
    %736 = vmatpush.msra.mxu0 0.0
    %737 = vmatpush.msra.mxu0 0.0
    %738 = vmatpush.msra.mxu0 0.0
    %739 = vmatpush.msra.mxu0 0.0
    %740 = vmatpush.msra.mxu0 0.0
    %741 = vmatpush.msra.mxu0 %v577
    %742 = vmatpush.msra.mxu0 %v576
    %743 = vmatpush.msra.mxu0 %v575
    %744 = vmatpush.msra.mxu0 %v574
    %745 = vmatmul.f32.gmra.mxu0 %v727
    %v746 = vpop.f32.mrf.mxu0
    %v747 = vadd.f32 0.0, %v746
    %748 = vdwg.mxu0
    %v749 = vadd.f32 %v723, %v747
    %v750 = vmul.f32 %v749, 0.5
    %v751 = vsel %vm69, %v749, %v750
    %v752 = vtanh.pop %v751
    %v753 = vmul.f32 %v752, 0.5
    %v754 = vadd.f32 %v753, 0.5
    %v755 = vsel %vm69, %v752, %v754
    %v756 = vmul.f32 %v755, %v716
    %758 = vrot.lane.b32.xlu0 %v755, 64
    %v759 = vpop.permute.xlu0 %758
    %v761 = vmul.f32 %v755, %v759
    %763 = vrot.lane.b32.xlu0 %v761, 32
    %v764 = vpop.permute.xlu0 %763
    %v766 = vadd.f32 %v756, %v764
    %v767 = vtanh.pop %v766
    %769 = vrot.lane.b32.xlu0 %v767, 64
    %v770 = vpop.permute.xlu0 %769
    %v772 = vmul.f32 %v755, %v770
    %v773 = vld [vmem:[#allocation2 + $0x8] sm:$0x3]
    %775 = vrot.lane.b32.xlu0 %v772, 32
    %v776 = vpop.permute.xlu0 %775
    %v777 = vsel %vm115, %v776, 0
    %779 = vmatpush.msra.mxu0 0.0
    %780 = vmatpush.msra.mxu0 0.0
    %781 = vmatpush.msra.mxu0 0.0
    %782 = vmatpush.msra.mxu0 0.0
    %783 = vmatpush.msra.mxu0 0.0
    %784 = vmatpush.msra.mxu0 0.0
    %785 = vmatpush.msra.mxu0 0.0
    %786 = vmatpush.msra.mxu0 0.0
    %787 = vmatpush.msra.mxu0 0.0
    %788 = vmatpush.msra.mxu0 0.0
    %789 = vmatpush.msra.mxu0 0.0
    %790 = vmatpush.msra.mxu0 0.0
    %791 = vmatpush.msra.mxu0 %v577
    %792 = vmatpush.msra.mxu0 %v576
    %793 = vmatpush.msra.mxu0 %v575
    %794 = vmatpush.msra.mxu0 %v574
    %795 = vmatmul.f32.gmra.mxu0 %v777
    %v796 = vpop.f32.mrf.mxu0
    %v797 = vadd.f32 0.0, %v796
    %798 = vdwg.mxu0
    %v799 = vadd.f32 %v773, %v797
    %v800 = vmul.f32 %v799, 0.5
    %v801 = vsel %vm69, %v799, %v800
    %v802 = vtanh.pop %v801
    %v803 = vmul.f32 %v802, 0.5
    %v804 = vadd.f32 %v803, 0.5
    %v805 = vsel %vm69, %v802, %v804
    %v806 = vmul.f32 %v805, %v766
    %808 = vrot.lane.b32.xlu0 %v805, 64
    %v809 = vpop.permute.xlu0 %808
    %v811 = vmul.f32 %v805, %v809
    %813 = vrot.lane.b32.xlu0 %v811, 32
    %v814 = vpop.permute.xlu0 %813
    %v816 = vadd.f32 %v806, %v814
    %v817 = vtanh.pop %v816
    %819 = vrot.lane.b32.xlu0 %v817, 64
    %v820 = vpop.permute.xlu0 %819
    %v822 = vmul.f32 %v805, %v820
    %v823 = vld [vmem:[#allocation2 + $0xa] sm:$0x3]
    %825 = vrot.lane.b32.xlu0 %v822, 32
    %v826 = vpop.permute.xlu0 %825
    %v827 = vsel %vm115, %v826, 0
    %829 = vmatpush.msra.mxu0 0.0
    %830 = vmatpush.msra.mxu0 0.0
    %831 = vmatpush.msra.mxu0 0.0
    %832 = vmatpush.msra.mxu0 0.0
    %833 = vmatpush.msra.mxu0 0.0
    %834 = vmatpush.msra.mxu0 0.0
    %835 = vmatpush.msra.mxu0 0.0
    %836 = vmatpush.msra.mxu0 0.0
    %837 = vmatpush.msra.mxu0 0.0
    %838 = vmatpush.msra.mxu0 0.0
    %839 = vmatpush.msra.mxu0 0.0
    %840 = vmatpush.msra.mxu0 0.0
    %841 = vmatpush.msra.mxu0 %v577
    %842 = vmatpush.msra.mxu0 %v576
    %843 = vmatpush.msra.mxu0 %v575
    %844 = vmatpush.msra.mxu0 %v574
    %845 = vmatmul.f32.gmra.mxu0 %v827
    %v846 = vpop.f32.mrf.mxu0
    %v847 = vadd.f32 0.0, %v846
    %848 = vdwg.mxu0
    %v849 = vadd.f32 %v823, %v847
    %v850 = vmul.f32 %v849, 0.5
    %v851 = vsel %vm69, %v849, %v850
    %v852 = vtanh.pop %v851
    %v853 = vmul.f32 %v852, 0.5
    %v854 = vadd.f32 %v853, 0.5
    %v855 = vsel %vm69, %v852, %v854
    %v856 = vmul.f32 %v855, %v816
    %858 = vrot.lane.b32.xlu0 %v855, 64
    %v859 = vpop.permute.xlu0 %858
    %v861 = vmul.f32 %v855, %v859
    %863 = vrot.lane.b32.xlu0 %v861, 32
    %v864 = vpop.permute.xlu0 %863
    %v866 = vadd.f32 %v856, %v864
    %v867 = vtanh.pop %v866
    %869 = vrot.lane.b32.xlu0 %v867, 64
    %v870 = vpop.permute.xlu0 %869
    %v872 = vmul.f32 %v855, %v870
    %v873 = vld [vmem:[#allocation2 + $0xc] sm:$0x3]
    %875 = vrot.lane.b32.xlu0 %v872, 32
    %v876 = vpop.permute.xlu0 %875
    %v877 = vsel %vm115, %v876, 0
    %879 = vmatpush.msra.mxu0 0.0
    %880 = vmatpush.msra.mxu0 0.0
    %881 = vmatpush.msra.mxu0 0.0
    %882 = vmatpush.msra.mxu0 0.0
    %883 = vmatpush.msra.mxu0 0.0
    %884 = vmatpush.msra.mxu0 0.0
    %885 = vmatpush.msra.mxu0 0.0
    %886 = vmatpush.msra.mxu0 0.0
    %887 = vmatpush.msra.mxu0 0.0
    %888 = vmatpush.msra.mxu0 0.0
    %889 = vmatpush.msra.mxu0 0.0
    %890 = vmatpush.msra.mxu0 0.0
    %891 = vmatpush.msra.mxu0 %v577
    %892 = vmatpush.msra.mxu0 %v576
    %893 = vmatpush.msra.mxu0 %v575
    %894 = vmatpush.msra.mxu0 %v574
    %895 = vmatmul.f32.gmra.mxu0 %v877
    %v896 = vpop.f32.mrf.mxu0
    %v897 = vadd.f32 0.0, %v896
    %898 = vdwg.mxu0
    %v899 = vadd.f32 %v873, %v897
    %v900 = vmul.f32 %v899, 0.5
    %v901 = vsel %vm69, %v899, %v900
    %v902 = vtanh.pop %v901
    %v903 = vmul.f32 %v902, 0.5
    %v904 = vadd.f32 %v903, 0.5
    %v905 = vsel %vm69, %v902, %v904
    %v906 = vmul.f32 %v905, %v866
    %908 = vrot.lane.b32.xlu0 %v905, 64
    %v909 = vpop.permute.xlu0 %908
    %v911 = vmul.f32 %v905, %v909
    %913 = vrot.lane.b32.xlu0 %v911, 32
    %v914 = vpop.permute.xlu0 %913
    %v916 = vadd.f32 %v906, %v914
    %v917 = vtanh.pop %v916
    %919 = vrot.lane.b32.xlu0 %v917, 64
    %v920 = vpop.permute.xlu0 %919
    %v922 = vmul.f32 %v905, %v920
    %v923 = vld [vmem:[#allocation2 + $0xe] sm:$0x3]
    %925 = vrot.lane.b32.xlu0 %v922, 32
    %v926 = vpop.permute.xlu0 %925
    %v927 = vsel %vm115, %v926, 0
    %929 = vmatpush.msra.mxu0 0.0
    %930 = vmatpush.msra.mxu0 0.0
    %931 = vmatpush.msra.mxu0 0.0
    %932 = vmatpush.msra.mxu0 0.0
    %933 = vmatpush.msra.mxu0 0.0
    %934 = vmatpush.msra.mxu0 0.0
    %935 = vmatpush.msra.mxu0 0.0
    %936 = vmatpush.msra.mxu0 0.0
    %937 = vmatpush.msra.mxu0 0.0
    %938 = vmatpush.msra.mxu0 0.0
    %939 = vmatpush.msra.mxu0 0.0
    %940 = vmatpush.msra.mxu0 0.0
    %941 = vmatpush.msra.mxu0 %v577
    %942 = vmatpush.msra.mxu0 %v576
    %943 = vmatpush.msra.mxu0 %v575
    %944 = vmatpush.msra.mxu0 %v574
    %945 = vmatmul.f32.gmra.mxu0 %v927
    %v946 = vpop.f32.mrf.mxu0
    %v947 = vadd.f32 0.0, %v946
    %948 = vdwg.mxu0
    %v949 = vadd.f32 %v923, %v947
    %v950 = vmul.f32 %v949, 0.5
    %v951 = vsel %vm69, %v949, %v950
    %v952 = vtanh.pop %v951
    %v953 = vmul.f32 %v952, 0.5
    %v954 = vadd.f32 %v953, 0.5
    %v955 = vsel %vm69, %v952, %v954
    %v956 = vmul.f32 %v955, %v916
    %958 = vrot.lane.b32.xlu0 %v955, 64
    %v959 = vpop.permute.xlu0 %958
    %v961 = vmul.f32 %v955, %v959
    %963 = vrot.lane.b32.xlu0 %v961, 32
    %v964 = vpop.permute.xlu0 %963
    %v966 = vadd.f32 %v956, %v964
    %v967 = vtanh.pop %v966
    %969 = vrot.lane.b32.xlu0 %v967, 64
    %v970 = vpop.permute.xlu0 %969
    %v972 = vmul.f32 %v955, %v970
    %v973 = vld [vmem:[%s7] sm:$0xff]
    %v974 = vld [vmem:[%s7 + $0x8] sm:$0xff]
    %v975 = vld [vmem:[%s7 + $0x10] sm:$0xff]
    %v976 = vld [vmem:[%s7 + $0x18] sm:$0xff]
    %v977 = vld [vmem:[%s8] sm:$0x1]
    %v979 = vperm.slane %v977, 0
    %982 = vrot.lane.b32.xlu0 %v972, 32
    %v983 = vpop.permute.xlu0 %982
    %v984 = vsel %vm115, %v983, 0
    %986 = vmatpush.msra.mxu0 0.0
    %987 = vmatpush.msra.mxu0 0.0
    %988 = vmatpush.msra.mxu0 0.0
    %989 = vmatpush.msra.mxu0 0.0
    %990 = vmatpush.msra.mxu0 0.0
    %991 = vmatpush.msra.mxu0 0.0
    %992 = vmatpush.msra.mxu0 0.0
    %993 = vmatpush.msra.mxu0 0.0
    %994 = vmatpush.msra.mxu0 0.0
    %995 = vmatpush.msra.mxu0 0.0
    %996 = vmatpush.msra.mxu0 0.0
    %997 = vmatpush.msra.mxu0 0.0
    %998 = vmatpush.msra.mxu0 %v976
    %999 = vmatpush.msra.mxu0 %v975
    %1000 = vmatpush.msra.mxu0 %v974
    %1001 = vmatpush.msra.mxu0 %v973
    %1002 = vmatmul.f32.gmra.mxu0 %v984
    %v1003 = vpop.f32.mrf.mxu0
    %v1004 = vadd.f32 %v979, %v1003
    %1005 = vdwg.mxu0
    %vm1006 = vcmask 74752
    %1007 = vst.msk [vmem:[#allocation9] sm:$0x3] %vm1006, %v1004
    // Predicated region
    $region46: #{robustlog_forward.1} parent=1 // pred_check
      _
    $region47: #{robustlog_forward.1} parent=1 // pred_check_branch
      %1009 = sbr.rel (0) target = $region49
    $region48: #{robustlog_forward.1} parent=1 // pred_region
      %1011 = vsyncadd [#allocation6], 0
      %s1013 = sshll.u32 [#allocation9], 4
      %s1014 = int_to_ptr.vmem [resolvable:$true] %s1013
      %s1015 = sshll.u32 %s9, 4
      %s1016 = int_to_ptr.hbm [resolvable:$true] %s1015
      %1018 = dma.vmem_to_hbm [thread:$0]  %s1014, 32, %s1016, [#allocation6]
    $region49: #{robustlog_forward.1} parent=1 // pred_fallthru
      _
    // Predicated region
    $region50: #{robustlog_forward.1} parent=1 // pred_check
      _
    $region51: #{robustlog_forward.1} parent=1 // pred_check_branch
      %1020 = sbr.rel (0) target = $region53
    $region52: #{robustlog_forward.1} parent=1 // pred_region
      %1022 = dma.done [#allocation6], 32
    $region53: #{robustlog_forward.1} parent=1 // pred_fallthru
      _
    %1023 = vsyncpa [#allocation5], 1
    %1024 = vsyncpa [#allocation8], 1
    %1025 = vsyncpa [#allocation6], 1

</llo_original>
